<compile_context>
chip_gen: v7x
topology: tpu7x:2x2x1
jax: 0.10.0
libtpu: 0.0.40
codegen_flags: <defaults>
</compile_context>

<pallas_src>
import functools

import jax
import jax.numpy as jnp
from jax import lax
from jax.experimental import pallas as pl
from jax.experimental.pallas import tpu as pltpu


def _round_up(v, m):
    return -(-int(v) // int(m)) * int(m)


def _default_num_splits():
    # v7x has 2 TensorCores per chip (megacore); v5e / v6e have 1, where a
    # "parallel" split axis is just a serial loop plus a wasted duplicate tile.
    try:
        kind = jax.devices()[0].device_kind.lower()
    except Exception:
        return 1
    return 2 if "7" in kind else 1


# ----------------------------------------------------------------------------
# Shared in-kernel math
# ----------------------------------------------------------------------------
def _ccm_tile(x, t, valid=None):
    """Un-normalized class-confusion contribution of one row tile.

    x: (rows, C) float32 logits (already scrubbed to 0 on padded rows).
    valid: optional (rows, 1) bool mask; padded rows contribute exactly zero.
    Returns (C, C) float32:  (softmax * w)^T @ softmax  with w = 1 + exp(-H).
    The global (n_sample / sum(w)) rescaling in the torch module is a scalar
    factor on this matrix and cancels exactly under the final column
    normalization ccm / ccm.sum(dim=1), so raw per-row weights are exact here.
    """
    logits = x * jnp.float32(1.0 / t)
    m = jnp.max(logits, axis=1, keepdims=True)
    e = jnp.exp(logits - m)
    z = jnp.sum(e, axis=1, keepdims=True)
    softmax = e / z
    # Torch-faithful entropy: Entropy() uses log(p + 1e-5).
    ent = -jnp.sum(softmax * jnp.log(softmax + 1e-5), axis=1, keepdims=True)
    w = 1.0 + jnp.exp(-ent)                                  # (rows, 1)
    sw = softmax * w
    if valid is not None:
        sw = jnp.where(valid, sw, 0.0)                       # zero padded rows
    # Contract over the row axis; lhs-contracting-dim-0 is the MXU's native
    # transposed-LHS form (no explicit XLU transpose of sw materializes).
    return lax.dot_general(
        sw, softmax,
        dimension_numbers=(((0,), (0,)), ((), ())),
        preferred_element_type=jnp.float32,
    )


def _mcc_from_ccm(ccm, n_class):
    row_sum = jnp.sum(ccm, axis=1)                           # (C,)
    # torch broadcast semantics of `ccm / ccm.sum(dim=1)`: col j / row_sum[j].
    norm = ccm / row_sum[None, :]
    ri = lax.broadcasted_iota(jnp.int32, (n_class, n_class), 0)
    ci = lax.broadcasted_iota(jnp.int32, (n_class, n_class), 1)
    diag = jnp.sum(jnp.where(ri == ci, norm, 0.0))
    return (jnp.sum(norm) - diag) / n_class


# ----------------------------------------------------------------------------
# Kernels
# ----------------------------------------------------------------------------
def _small_fused_kernel(x_ref, loss_ref, *, t, n_class):
    """Fast path: whole array resident in VMEM, no grid, scalar loss to SMEM."""
    ccm = _ccm_tile(x_ref[...].astype(jnp.float32), t)
    loss_ref[0, 0] = _mcc_from_ccm(ccm, n_class)


def _ccm_stream_fused_kernel(x_ref, loss_ref, ccm_ref, *,
                             t, n_sample, n_class, tile_n):
    """Single-split streaming path with the finalize fused into the last step."""
    i = pl.program_id(0)

    @pl.when(i == 0)
    def _init():
        ccm_ref[...] = jnp.zeros_like(ccm_ref)
        loss_ref[0, 0] = 0.0

    row_start = i * tile_n

    @pl.when(row_start + tile_n <= n_sample)
    def _full_tile():                      # unmasked common path
        ccm_ref[...] += _ccm_tile(x_ref[...].astype(jnp.float32), t)

    @pl.when(row_start + tile_n > n_sample)
    def _boundary_tile():                  # only the (single) partial last tile
        rows = row_start + lax.broadcasted_iota(jnp.int32, (tile_n, 1), 0)
        valid = rows < n_sample
        # Scrub is load-bearing: out-of-bounds rows are undefined and would
        # otherwise reach the un-masked softmax operand of the matmul.
        x = jnp.where(valid, x_ref[...].astype(jnp.float32), 0.0)
        ccm_ref[...] += _ccm_tile(x, t, valid=valid)

    @pl.when(i == pl.num_programs(0) - 1)
    def _finalize():                       # fused epilogue: no second launch
        loss_ref[0, 0] = _mcc_from_ccm(ccm_ref[...], n_class)


def _ccm_stream_partial_kernel(x_ref, pccm_ref, *,
                               t, n_sample, tile_n, tiles_per_split):
    """Multi-split (v7x megacore) streaming path: per-split raw partials."""
    p = pl.program_id(0)                   # parallel split (one per TensorCore)
    i = pl.program_id(1)                   # reduction step within the split

    @pl.when(i == 0)
    def _init():
        pccm_ref[...] = jnp.zeros_like(pccm_ref)

    row_start = (p * tiles_per_split + i) * tile_n

    @pl.when(row_start + tile_n <= n_sample)
    def _full_tile():                      # unmasked common path
        pccm_ref[...] += _ccm_tile(x_ref[...].astype(jnp.float32), t)

    @pl.when(jnp.logical_and(row_start < n_sample, row_start + tile_n > n_sample))
    def _boundary_tile():                  # single partial tile
        rows = row_start + lax.broadcasted_iota(jnp.int32, (tile_n, 1), 0)
        valid = rows < n_sample
        x = jnp.where(valid, x_ref[...].astype(jnp.float32), 0.0)
        pccm_ref[...] += _ccm_tile(x, t, valid=valid)
    # row_start >= n_sample: fully-clamped duplicate tile -> skipped entirely.


def _finalize_kernel(pccm_ref, loss_ref, *, n_class):
    """Reduce per-split partials, normalize, trace, scalar loss (multi-split)."""
    ccm = jnp.sum(pccm_ref[...], axis=0)
    loss_ref[0, 0] = _mcc_from_ccm(ccm, n_class)


# ----------------------------------------------------------------------------
# Wrapper
# ----------------------------------------------------------------------------
def class_confusion_loss(output: jax.Array, t: float, *,
                         tile_n: int = 2048,
                         num_splits: int | None = None,
                         fast_path_bytes: int = 2 * 1024 * 1024) -> jax.Array:
    """Pallas TPU implementation of ClassConfusionLoss(t).forward(output)."""
    n_sample, n_class = output.shape
    t = float(t)
    c_pad = _round_up(n_class, 128)        # lane-padded class dim

    # ---- Fast path: single un-gridded kernel, finalize fused, no masking ----
    if n_sample * c_pad * 4 <= fast_path_bytes:
        loss = pl.pallas_call(
            functools.partial(_small_fused_kernel, t=t, n_class=n_class),
            out_shape=jax.ShapeDtypeStruct((1, 1), jnp.float32),
            in_specs=[pl.BlockSpec(memory_space=pltpu.VMEM)],
            out_specs=pl.BlockSpec(memory_space=pltpu.SMEM),
        )(output)
        return loss[0, 0]

    # ---- Streamed path: tile rows, accumulate resident (C, C) f32 ----------
    itemsize = int(output.dtype.itemsize)
    # Sublane multiple for the native-dtype block: 8 (f32) / 16 (bf16) / 32 (i8).
    sub = max(8, 32 // max(itemsize, 1))
    # Cap tile so double-buffered native input + ~5 f32 temporaries stay well
    # under v5e's 16 MiB default scoped VMEM (also far under v7x's 32 MiB),
    # so no vmem_limit_bytes override is required on any generation.
    max_tile_elems = (8 * 1024 * 1024) // 32
    tile_n = int(tile_n)
    tile_n = min(tile_n, max(sub, max_tile_elems // c_pad))
    tile_n = max(sub, min(tile_n, _round_up(n_sample, sub)))
    tile_n = _round_up(tile_n, sub)

    total_tiles = pl.cdiv(n_sample, tile_n)

    if num_splits is None:
        num_splits = _default_num_splits()
    num_splits = max(1, min(int(num_splits), total_tiles))

    if num_splits == 1:
        # Single TensorCore path: one launch, finalize fused into last step.
        loss = pl.pallas_call(
            functools.partial(_ccm_stream_fused_kernel, t=t, n_sample=n_sample,
                              n_class=n_class, tile_n=tile_n),
            out_shape=jax.ShapeDtypeStruct((1, 1), jnp.float32),
            grid_spec=pltpu.PrefetchScalarGridSpec(
                num_scalar_prefetch=0,
                grid=(total_tiles,),
                in_specs=[pl.BlockSpec((tile_n, n_class), lambda i: (i, 0))],
                out_specs=pl.BlockSpec((1, 1), lambda i: (0, 0),
                                       memory_space=pltpu.SMEM),
                scratch_shapes=[pltpu.VMEM((n_class, n_class), jnp.float32)],
            ),
            compiler_params=pltpu.CompilerParams(
                dimension_semantics=("arbitrary",)),
        )(output)
        return loss[0, 0]

    # Multi-split path (v7x: one split per TensorCore via the "parallel" axis).
    tiles_per_split = pl.cdiv(total_tiles, num_splits)

    def x_index_map(p, i):
        # Clamp so the DMA window always starts inside the array; clamped
        # duplicate tiles are fully skipped inside the kernel.
        idx = p * tiles_per_split + i
        return (jnp.minimum(idx, total_tiles - 1), 0)

    partial_ccm = pl.pallas_call(
        functools.partial(_ccm_stream_partial_kernel, t=t, n_sample=n_sample,
                          tile_n=tile_n, tiles_per_split=tiles_per_split),
        out_shape=jax.ShapeDtypeStruct((num_splits, n_class, n_class),
                                       jnp.float32),
        grid_spec=pltpu.PrefetchScalarGridSpec(
            num_scalar_prefetch=0,
            grid=(num_splits, tiles_per_split),
            in_specs=[pl.BlockSpec((tile_n, n_class), x_index_map)],
            out_specs=pl.BlockSpec((None, n_class, n_class),
                                   lambda p, i: (p, 0, 0)),
        ),
        compiler_params=pltpu.CompilerParams(
            dimension_semantics=("parallel", "arbitrary")),
    )(output)   # native dtype (bf16 OK) — no host-side f32 cast

    loss = pl.pallas_call(
        functools.partial(_finalize_kernel, n_class=n_class),
        out_shape=jax.ShapeDtypeStruct((1, 1), jnp.float32),
        in_specs=[pl.BlockSpec(memory_space=pltpu.VMEM)],
        out_specs=pl.BlockSpec(memory_space=pltpu.SMEM),
    )(partial_ccm)
    return loss[0, 0]


# ----------------------------------------------------------------------------
# Pure-JAX reference (same math as the PyTorch module)
# ----------------------------------------------------------------------------
def _reference(output, t):
    n_sample, n_class = output.shape
    softmax = jax.nn.softmax(output.astype(jnp.float32) / t, axis=1)
    ent = -jnp.sum(softmax * jnp.log(softmax + 1e-5), axis=1)
    w = 1.0 + jnp.exp(-ent)
    w = (n_sample * w / jnp.sum(w))[:, None]
    ccm = (softmax * w).T @ softmax
    ccm = ccm / jnp.sum(ccm, axis=1)   # torch broadcast: columns / row sums
    return (jnp.sum(ccm) - jnp.trace(ccm)) / n_class


if __name__ == "__main__":
    # Module "parameter": temperature t (set deterministically in-script).
    T = 2.5

    key = jax.random.PRNGKey(0)
    n_sample, n_class = 600, 32
    output = jax.random.normal(key, (n_sample, n_class), dtype=jnp.float32)

    ref = _reference(output, T)

    # 1) Default dispatch: small shape -> single un-gridded fast-path kernel.
    loss_fast = jax.block_until_ready(class_confusion_loss(output, T))
    assert jnp.allclose(loss_fast, ref, rtol=1e-4, atol=1e-5), (loss_fast, ref)

    # 2) Force the streamed single-split path (fused finalize, partial last tile).
    loss_tiled = jax.block_until_ready(
        class_confusion_loss(output, T, tile_n=128, num_splits=1,
                             fast_path_bytes=0))
    assert jnp.allclose(loss_tiled, ref, rtol=1e-4, atol=1e-5), (loss_tiled, ref)

    # 3) Force the multi-split (megacore) path, incl. the skipped clamped tile.
    loss_split = jax.block_until_ready(
        class_confusion_loss(output, T, tile_n=128, num_splits=2,
                             fast_path_bytes=0))
    assert jnp.allclose(loss_split, ref, rtol=1e-4, atol=1e-5), (loss_split, ref)

    print("KERNEL_OK")
</pallas_src>

<mosaic_0001>
module attributes {stable_mosaic.version = 11 : i64} {
  func.func @_small_fused_kernel(%arg0: memref<600x32xf32, #tpu.memory_space<vmem>>, %arg1: memref<1x1xf32, #tpu.memory_space<smem>>) attributes {dimension_semantics = [], scalar_prefetch = 0 : i64, scratch_operands = 0 : i64, tpu.core_type = #tpu.core_type<tc>} {
    %c0 = arith.constant 0 : index
    %c0_0 = arith.constant 0 : index
    %0 = vector.load %arg0[%c0, %c0_0] : memref<600x32xf32, #tpu.memory_space<vmem>>, vector<600x32xf32>
    %cst = arith.constant 4.000000e-01 : f32
    %1 = vector.broadcast %cst : f32 to vector<600x32xf32>
    %2 = arith.mulf %0, %1 : vector<600x32xf32>
    %cst_1 = arith.constant dense<0xFF800000> : vector<600xf32>
    %3 = vector.multi_reduction <maximumf>, %2, %cst_1 [1] : vector<600x32xf32> to vector<600xf32>
    %4 = vector.shape_cast %3 : vector<600xf32> to vector<600x1xf32>
    %5 = vector.broadcast %4 : vector<600x1xf32> to vector<600x32xf32>
    %6 = arith.subf %2, %5 : vector<600x32xf32>
    %7 = math.exp %6 : vector<600x32xf32>
    %cst_2 = arith.constant dense<0.000000e+00> : vector<600xf32>
    %8 = vector.multi_reduction <add>, %7, %cst_2 [1] : vector<600x32xf32> to vector<600xf32>
    %9 = vector.shape_cast %8 : vector<600xf32> to vector<600x1xf32>
    %10 = vector.broadcast %9 : vector<600x1xf32> to vector<600x32xf32>
    %11 = arith.divf %7, %10 : vector<600x32xf32>
    %cst_3 = arith.constant 9.99999974E-6 : f32
    %12 = vector.broadcast %cst_3 : f32 to vector<600x32xf32>
    %13 = arith.addf %11, %12 : vector<600x32xf32>
    %14 = math.log %13 : vector<600x32xf32>
    %15 = arith.mulf %11, %14 : vector<600x32xf32>
    %cst_4 = arith.constant dense<0.000000e+00> : vector<600xf32>
    %16 = vector.multi_reduction <add>, %15, %cst_4 [1] : vector<600x32xf32> to vector<600xf32>
    %17 = vector.shape_cast %16 : vector<600xf32> to vector<600x1xf32>
    %cst_5 = arith.constant 0.000000e+00 : f32
    %18 = vector.broadcast %cst_5 : f32 to vector<600x1xf32>
    %19 = arith.subf %18, %17 : vector<600x1xf32>
    %cst_6 = arith.constant 0.000000e+00 : f32
    %20 = vector.broadcast %cst_6 : f32 to vector<600x1xf32>
    %21 = arith.subf %20, %19 : vector<600x1xf32>
    %22 = math.exp %21 : vector<600x1xf32>
    %cst_7 = arith.constant 1.000000e+00 : f32
    %23 = vector.broadcast %cst_7 : f32 to vector<600x1xf32>
    %24 = arith.addf %23, %22 : vector<600x1xf32>
    %25 = vector.broadcast %24 : vector<600x1xf32> to vector<600x32xf32>
    %26 = arith.mulf %11, %25 : vector<600x32xf32>
    %cst_8 = arith.constant dense<0.000000e+00> : vector<32x32xf32>
    %27 = tpu.matmul %26, %11, %cst_8 {dimension_numbers = #tpu.dot_dimension_numbers<[0], [0], [1], [1], [0, 1, 1, 1], [], []>} : vector<600x32xf32>, vector<600x32xf32>, vector<32x32xf32> -> vector<32x32xf32>
    %cst_9 = arith.constant dense<0.000000e+00> : vector<32xf32>
    %28 = vector.multi_reduction <add>, %27, %cst_9 [1] : vector<32x32xf32> to vector<32xf32>
    %29 = vector.shape_cast %28 : vector<32xf32> to vector<1x32xf32>
    %30 = vector.broadcast %29 : vector<1x32xf32> to vector<32x32xf32>
    %31 = arith.divf %27, %30 : vector<32x32xf32>
    %32 = tpu.iota {dimensions = array<i32: 0>} : vector<32x32xi32>
    %33 = tpu.iota {dimensions = array<i32: 1>} : vector<32x32xi32>
    %34 = arith.cmpi eq, %32, %33 : vector<32x32xi32>
    %cst_10 = arith.constant 0.000000e+00 : f32
    %35 = vector.broadcast %cst_10 : f32 to vector<32x32xf32>
    %36 = arith.select %34, %31, %35 : vector<32x32xi1>, vector<32x32xf32>
    %37 = vector.shape_cast %36 : vector<32x32xf32> to vector<1x32x32xf32>
    %cst_11 = arith.constant dense<0.000000e+00> : vector<1xf32>
    %38 = vector.multi_reduction <add>, %37, %cst_11 [1, 2] : vector<1x32x32xf32> to vector<1xf32>
    %39 = vector.shape_cast %38 : vector<1xf32> to vector<1x1x1xf32>
    %40 = vector.extract %39[0, 0, 0] : f32 from vector<1x1x1xf32>
    %41 = vector.shape_cast %31 : vector<32x32xf32> to vector<1x32x32xf32>
    %cst_12 = arith.constant dense<0.000000e+00> : vector<1xf32>
    %42 = vector.multi_reduction <add>, %41, %cst_12 [1, 2] : vector<1x32x32xf32> to vector<1xf32>
    %43 = vector.shape_cast %42 : vector<1xf32> to vector<1x1x1xf32>
    %44 = vector.extract %43[0, 0, 0] : f32 from vector<1x1x1xf32>
    %45 = arith.subf %44, %40 : f32
    %cst_13 = arith.constant 3.200000e+01 : f32
    %46 = arith.divf %45, %cst_13 : f32
    %c0_14 = arith.constant 0 : index
    %c0_15 = arith.constant 0 : index
    %47 = memref.load %arg1[%c0_14, %c0_15] : memref<1x1xf32, #tpu.memory_space<smem>>
    memref.store %46, %arg1[%c0_14, %c0_15] : memref<1x1xf32, #tpu.memory_space<smem>>
    return
  }
}

</mosaic_0001>

<llo_original>
// kernel: tpu_custom_call.1
$region0: #{tpu_custom_call.1}
  #allocation0 [shape = 'u32[]', space=smem, size = 0x4, offset = 0x4, fixed_abs, tag = 'smem constant byte address 0x4 - core index']
  #allocation1 [shape = 'u32[144,128]{1,0:T(1,128)}', space=vmem, size = 0x12000, scoped, tag = 'internal scratch']
  %s0 = inlined_call_operand.vmem [shape: f32[600,32], index: 0, kind: input, shape index: {}]
  %s1 = inlined_call_operand.hbm [shape: f32[1,1], index: 1, kind: output, shape index: {}]
  %s2 = sld [smem:[#allocation0]]
  $region14: #{tpu_custom_call.1} parent=0
    _
  %s4 = ssub.s32 1, %s2
  %s5 = scalar_select 0, %s4, %s2
  $region1: #{tpu_custom_call.1} parent=0
    #allocation2 [shape = 'u8[512]{0}', space=smem, size = 0x200, scoped, tag = 'output window, operand 0, single buffered']
    #allocation3 [shape = 's32[1]{0}', space=sflag, size = 0x4, scoped, tag = 'scoped memory for tpu_custom_call.1']
    %6 = vsyncpa [#allocation3], 0
    // Predicated region
    $region2: #{tpu_custom_call.1} parent=1 // pred_check
      _
    $region3: #{tpu_custom_call.1} parent=1 // pred_check_branch
      %8 = sbr.rel (0) target = $region5
    $region4: #{tpu_custom_call.1} parent=1 // pred_region
      _
    $region5: #{tpu_custom_call.1} parent=1 // pred_fallthru
      _
    %v9 = vld [vmem:[%s0] sm:$0xff]
    %v10 = vld [vmem:[%s0 + $0x8] sm:$0xff]
    %v11 = vld [vmem:[%s0 + $0x10] sm:$0xff]
    %v12 = vld [vmem:[%s0 + $0x18] sm:$0xff]
    %v13 = vld [vmem:[%s0 + $0x20] sm:$0xff]
    %v14 = vld [vmem:[%s0 + $0x28] sm:$0xff]
    %v15 = vld [vmem:[%s0 + $0x30] sm:$0xff]
    %v16 = vld [vmem:[%s0 + $0x38] sm:$0xff]
    %v17 = vld [vmem:[%s0 + $0x40] sm:$0xff]
    %v18 = vld [vmem:[%s0 + $0x48] sm:$0xff]
    %v19 = vld [vmem:[%s0 + $0x50] sm:$0xff]
    %v20 = vld [vmem:[%s0 + $0x58] sm:$0xff]
    %v21 = vld [vmem:[%s0 + $0x60] sm:$0xff]
    %v22 = vld [vmem:[%s0 + $0x68] sm:$0xff]
    %v23 = vld [vmem:[%s0 + $0x70] sm:$0xff]
    %v24 = vld [vmem:[%s0 + $0x78] sm:$0xff]
    %v25 = vld [vmem:[%s0 + $0x80] sm:$0xff]
    %v26 = vld [vmem:[%s0 + $0x88] sm:$0xff]
    %v27 = vld [vmem:[%s0 + $0x90] sm:$0xff]
    %v28 = vld [vmem:[%s0 + $0x98] sm:$0xff]
    %v29 = vld [vmem:[%s0 + $0xa0] sm:$0xff]
    %v30 = vld [vmem:[%s0 + $0xa8] sm:$0xff]
    %v31 = vld [vmem:[%s0 + $0xb0] sm:$0xff]
    %v32 = vld [vmem:[%s0 + $0xb8] sm:$0xff]
    %v33 = vld [vmem:[%s0 + $0xc0] sm:$0xff]
    %v34 = vld [vmem:[%s0 + $0xc8] sm:$0xff]
    %v35 = vld [vmem:[%s0 + $0xd0] sm:$0xff]
    %v36 = vld [vmem:[%s0 + $0xd8] sm:$0xff]
    %v37 = vld [vmem:[%s0 + $0xe0] sm:$0xff]
    %v38 = vld [vmem:[%s0 + $0xe8] sm:$0xff]
    %v39 = vld [vmem:[%s0 + $0xf0] sm:$0xff]
    %v40 = vld [vmem:[%s0 + $0xf8] sm:$0xff]
    %v41 = vld [vmem:[%s0 + $0x100] sm:$0xff]
    %v42 = vld [vmem:[%s0 + $0x108] sm:$0xff]
    %v43 = vld [vmem:[%s0 + $0x110] sm:$0xff]
    %v44 = vld [vmem:[%s0 + $0x118] sm:$0xff]
    %v45 = vld [vmem:[%s0 + $0x120] sm:$0xff]
    %v46 = vld [vmem:[%s0 + $0x128] sm:$0xff]
    %v47 = vld [vmem:[%s0 + $0x130] sm:$0xff]
    %v48 = vld [vmem:[%s0 + $0x138] sm:$0xff]
    %v49 = vld [vmem:[%s0 + $0x140] sm:$0xff]
    %v50 = vld [vmem:[%s0 + $0x148] sm:$0xff]
    %v51 = vld [vmem:[%s0 + $0x150] sm:$0xff]
    %v52 = vld [vmem:[%s0 + $0x158] sm:$0xff]
    %v53 = vld [vmem:[%s0 + $0x160] sm:$0xff]
    %v54 = vld [vmem:[%s0 + $0x168] sm:$0xff]
    %v55 = vld [vmem:[%s0 + $0x170] sm:$0xff]
    %v56 = vld [vmem:[%s0 + $0x178] sm:$0xff]
    %v57 = vld [vmem:[%s0 + $0x180] sm:$0xff]
    %v58 = vld [vmem:[%s0 + $0x188] sm:$0xff]
    %v59 = vld [vmem:[%s0 + $0x190] sm:$0xff]
    %v60 = vld [vmem:[%s0 + $0x198] sm:$0xff]
    %v61 = vld [vmem:[%s0 + $0x1a0] sm:$0xff]
    %v62 = vld [vmem:[%s0 + $0x1a8] sm:$0xff]
    %v63 = vld [vmem:[%s0 + $0x1b0] sm:$0xff]
    %v64 = vld [vmem:[%s0 + $0x1b8] sm:$0xff]
    %v65 = vld [vmem:[%s0 + $0x1c0] sm:$0xff]
    %v66 = vld [vmem:[%s0 + $0x1c8] sm:$0xff]
    %v67 = vld [vmem:[%s0 + $0x1d0] sm:$0xff]
    %v68 = vld [vmem:[%s0 + $0x1d8] sm:$0xff]
    %v69 = vld [vmem:[%s0 + $0x1e0] sm:$0xff]
    %v70 = vld [vmem:[%s0 + $0x1e8] sm:$0xff]
    %v71 = vld [vmem:[%s0 + $0x1f0] sm:$0xff]
    %v72 = vld [vmem:[%s0 + $0x1f8] sm:$0xff]
    %v73 = vld [vmem:[%s0 + $0x200] sm:$0xff]
    %v74 = vld [vmem:[%s0 + $0x208] sm:$0xff]
    %v75 = vld [vmem:[%s0 + $0x210] sm:$0xff]
    %v76 = vld [vmem:[%s0 + $0x218] sm:$0xff]
    %v77 = vld [vmem:[%s0 + $0x220] sm:$0xff]
    %v78 = vld [vmem:[%s0 + $0x228] sm:$0xff]
    %v79 = vld [vmem:[%s0 + $0x230] sm:$0xff]
    %v80 = vld [vmem:[%s0 + $0x238] sm:$0xff]
    %v81 = vld [vmem:[%s0 + $0x240] sm:$0xff]
    %v82 = vld [vmem:[%s0 + $0x248] sm:$0xff]
    %v83 = vld [vmem:[%s0 + $0x250] sm:$0xff]
    %v84 = vmul.f32 %v9, 0.4
    %v85 = vmul.f32 %v10, 0.4
    %v86 = vmul.f32 %v11, 0.4
    %v87 = vmul.f32 %v12, 0.4
    %v88 = vmul.f32 %v13, 0.4
    %v89 = vmul.f32 %v14, 0.4
    %v90 = vmul.f32 %v15, 0.4
    %v91 = vmul.f32 %v16, 0.4
    %v92 = vmul.f32 %v17, 0.4
    %v93 = vmul.f32 %v18, 0.4
    %v94 = vmul.f32 %v19, 0.4
    %v95 = vmul.f32 %v20, 0.4
    %v96 = vmul.f32 %v21, 0.4
    %v97 = vmul.f32 %v22, 0.4
    %v98 = vmul.f32 %v23, 0.4
    %v99 = vmul.f32 %v24, 0.4
    %v100 = vmul.f32 %v25, 0.4
    %v101 = vmul.f32 %v26, 0.4
    %v102 = vmul.f32 %v27, 0.4
    %v103 = vmul.f32 %v28, 0.4
    %v104 = vmul.f32 %v29, 0.4
    %v105 = vmul.f32 %v30, 0.4
    %v106 = vmul.f32 %v31, 0.4
    %v107 = vmul.f32 %v32, 0.4
    %v108 = vmul.f32 %v33, 0.4
    %v109 = vmul.f32 %v34, 0.4
    %v110 = vmul.f32 %v35, 0.4
    %v111 = vmul.f32 %v36, 0.4
    %v112 = vmul.f32 %v37, 0.4
    %v113 = vmul.f32 %v38, 0.4
    %v114 = vmul.f32 %v39, 0.4
    %v115 = vmul.f32 %v40, 0.4
    %v116 = vmul.f32 %v41, 0.4
    %v117 = vmul.f32 %v42, 0.4
    %v118 = vmul.f32 %v43, 0.4
    %v119 = vmul.f32 %v44, 0.4
    %v120 = vmul.f32 %v45, 0.4
    %v121 = vmul.f32 %v46, 0.4
    %v122 = vmul.f32 %v47, 0.4
    %v123 = vmul.f32 %v48, 0.4
    %v124 = vmul.f32 %v49, 0.4
    %v125 = vmul.f32 %v50, 0.4
    %v126 = vmul.f32 %v51, 0.4
    %v127 = vmul.f32 %v52, 0.4
    %v128 = vmul.f32 %v53, 0.4
    %v129 = vmul.f32 %v54, 0.4
    %v130 = vmul.f32 %v55, 0.4
    %v131 = vmul.f32 %v56, 0.4
    %v132 = vmul.f32 %v57, 0.4
    %v133 = vmul.f32 %v58, 0.4
    %v134 = vmul.f32 %v59, 0.4
    %v135 = vmul.f32 %v60, 0.4
    %v136 = vmul.f32 %v61, 0.4
    %v137 = vmul.f32 %v62, 0.4
    %v138 = vmul.f32 %v63, 0.4
    %v139 = vmul.f32 %v64, 0.4
    %v140 = vmul.f32 %v65, 0.4
    %v141 = vmul.f32 %v66, 0.4
    %v142 = vmul.f32 %v67, 0.4
    %v143 = vmul.f32 %v68, 0.4
    %v144 = vmul.f32 %v69, 0.4
    %v145 = vmul.f32 %v70, 0.4
    %v146 = vmul.f32 %v71, 0.4
    %v147 = vmul.f32 %v72, 0.4
    %v148 = vmul.f32 %v73, 0.4
    %v149 = vmul.f32 %v74, 0.4
    %v150 = vmul.f32 %v75, 0.4
    %v151 = vmul.f32 %v76, 0.4
    %v152 = vmul.f32 %v77, 0.4
    %v153 = vmul.f32 %v78, 0.4
    %v154 = vmul.f32 %v79, 0.4
    %v155 = vmul.f32 %v80, 0.4
    %v156 = vmul.f32 %v81, 0.4
    %v157 = vmul.f32 %v82, 0.4
    %v158 = vmul.f32 %v83, 0.4
    %vm159 = vcmask 261120
    %v160 = vsel %vm159, %v84, -inf
    %161 = vmax.xlane.f32.xlu0 %v160
    %v162 = vpop.xlane.xlu0 %161
    %v163 = vsel %vm159, %v85, -inf
    %164 = vmax.xlane.f32.xlu0 %v163
    %v165 = vpop.xlane.xlu0 %164
    %v166 = vsel %vm159, %v86, -inf
    %167 = vmax.xlane.f32.xlu0 %v166
    %v168 = vpop.xlane.xlu0 %167
    %v169 = vsel %vm159, %v87, -inf
    %170 = vmax.xlane.f32.xlu0 %v169
    %v171 = vpop.xlane.xlu0 %170
    %v172 = vsel %vm159, %v88, -inf
    %173 = vmax.xlane.f32.xlu0 %v172
    %v174 = vpop.xlane.xlu0 %173
    %v175 = vsel %vm159, %v89, -inf
    %176 = vmax.xlane.f32.xlu0 %v175
    %v177 = vpop.xlane.xlu0 %176
    %v178 = vsel %vm159, %v90, -inf
    %179 = vmax.xlane.f32.xlu0 %v178
    %v180 = vpop.xlane.xlu0 %179
    %v181 = vsel %vm159, %v91, -inf
    %182 = vmax.xlane.f32.xlu0 %v181
    %v183 = vpop.xlane.xlu0 %182
    %v184 = vsel %vm159, %v92, -inf
    %185 = vmax.xlane.f32.xlu0 %v184
    %v186 = vpop.xlane.xlu0 %185
    %v187 = vsel %vm159, %v93, -inf
    %188 = vmax.xlane.f32.xlu0 %v187
    %v189 = vpop.xlane.xlu0 %188
    %v190 = vsel %vm159, %v94, -inf
    %191 = vmax.xlane.f32.xlu0 %v190
    %v192 = vpop.xlane.xlu0 %191
    %v193 = vsel %vm159, %v95, -inf
    %194 = vmax.xlane.f32.xlu0 %v193
    %v195 = vpop.xlane.xlu0 %194
    %v196 = vsel %vm159, %v96, -inf
    %197 = vmax.xlane.f32.xlu0 %v196
    %v198 = vpop.xlane.xlu0 %197
    %v199 = vsel %vm159, %v97, -inf
    %200 = vmax.xlane.f32.xlu0 %v199
    %v201 = vpop.xlane.xlu0 %200
    %v202 = vsel %vm159, %v98, -inf
    %203 = vmax.xlane.f32.xlu0 %v202
    %v204 = vpop.xlane.xlu0 %203
    %v205 = vsel %vm159, %v99, -inf
    %206 = vmax.xlane.f32.xlu0 %v205
    %v207 = vpop.xlane.xlu0 %206
    %v208 = vsel %vm159, %v100, -inf
    %209 = vmax.xlane.f32.xlu0 %v208
    %v210 = vpop.xlane.xlu0 %209
    %v211 = vsel %vm159, %v101, -inf
    %212 = vmax.xlane.f32.xlu0 %v211
    %v213 = vpop.xlane.xlu0 %212
    %v214 = vsel %vm159, %v102, -inf
    %215 = vmax.xlane.f32.xlu0 %v214
    %v216 = vpop.xlane.xlu0 %215
    %v217 = vsel %vm159, %v103, -inf
    %218 = vmax.xlane.f32.xlu0 %v217
    %v219 = vpop.xlane.xlu0 %218
    %v220 = vsel %vm159, %v104, -inf
    %221 = vmax.xlane.f32.xlu0 %v220
    %v222 = vpop.xlane.xlu0 %221
    %v223 = vsel %vm159, %v105, -inf
    %224 = vmax.xlane.f32.xlu0 %v223
    %v225 = vpop.xlane.xlu0 %224
    %v226 = vsel %vm159, %v106, -inf
    %227 = vmax.xlane.f32.xlu0 %v226
    %v228 = vpop.xlane.xlu0 %227
    %v229 = vsel %vm159, %v107, -inf
    %230 = vmax.xlane.f32.xlu0 %v229
    %v231 = vpop.xlane.xlu0 %230
    %v232 = vsel %vm159, %v108, -inf
    %233 = vmax.xlane.f32.xlu0 %v232
    %v234 = vpop.xlane.xlu0 %233
    %v235 = vsel %vm159, %v109, -inf
    %236 = vmax.xlane.f32.xlu0 %v235
    %v237 = vpop.xlane.xlu0 %236
    %v238 = vsel %vm159, %v110, -inf
    %239 = vmax.xlane.f32.xlu0 %v238
    %v240 = vpop.xlane.xlu0 %239
    %v241 = vsel %vm159, %v111, -inf
    %242 = vmax.xlane.f32.xlu0 %v241
    %v243 = vpop.xlane.xlu0 %242
    %v244 = vsel %vm159, %v112, -inf
    %245 = vmax.xlane.f32.xlu0 %v244
    %v246 = vpop.xlane.xlu0 %245
    %v247 = vsel %vm159, %v113, -inf
    %248 = vmax.xlane.f32.xlu0 %v247
    %v249 = vpop.xlane.xlu0 %248
    %v250 = vsel %vm159, %v114, -inf
    %251 = vmax.xlane.f32.xlu0 %v250
    %v252 = vpop.xlane.xlu0 %251
    %v253 = vsel %vm159, %v115, -inf
    %254 = vmax.xlane.f32.xlu0 %v253
    %v255 = vpop.xlane.xlu0 %254
    %v256 = vsel %vm159, %v116, -inf
    %257 = vmax.xlane.f32.xlu0 %v256
    %v258 = vpop.xlane.xlu0 %257
    %v259 = vsel %vm159, %v117, -inf
    %260 = vmax.xlane.f32.xlu0 %v259
    %v261 = vpop.xlane.xlu0 %260
    %v262 = vsel %vm159, %v118, -inf
    %263 = vmax.xlane.f32.xlu0 %v262
    %v264 = vpop.xlane.xlu0 %263
    %v265 = vsel %vm159, %v119, -inf
    %266 = vmax.xlane.f32.xlu0 %v265
    %v267 = vpop.xlane.xlu0 %266
    %v268 = vsel %vm159, %v120, -inf
    %269 = vmax.xlane.f32.xlu0 %v268
    %v270 = vpop.xlane.xlu0 %269
    %v271 = vsel %vm159, %v121, -inf
    %272 = vmax.xlane.f32.xlu0 %v271
    %v273 = vpop.xlane.xlu0 %272
    %v274 = vsel %vm159, %v122, -inf
    %275 = vmax.xlane.f32.xlu0 %v274
    %v276 = vpop.xlane.xlu0 %275
    %v277 = vsel %vm159, %v123, -inf
    %278 = vmax.xlane.f32.xlu0 %v277
    %v279 = vpop.xlane.xlu0 %278
    %v280 = vsel %vm159, %v124, -inf
    %281 = vmax.xlane.f32.xlu0 %v280
    %v282 = vpop.xlane.xlu0 %281
    %v283 = vsel %vm159, %v125, -inf
    %284 = vmax.xlane.f32.xlu0 %v283
    %v285 = vpop.xlane.xlu0 %284
    %v286 = vsel %vm159, %v126, -inf
    %287 = vmax.xlane.f32.xlu0 %v286
    %v288 = vpop.xlane.xlu0 %287
    %v289 = vsel %vm159, %v127, -inf
    %290 = vmax.xlane.f32.xlu0 %v289
    %v291 = vpop.xlane.xlu0 %290
    %v292 = vsel %vm159, %v128, -inf
    %293 = vmax.xlane.f32.xlu0 %v292
    %v294 = vpop.xlane.xlu0 %293
    %v295 = vsel %vm159, %v129, -inf
    %296 = vmax.xlane.f32.xlu0 %v295
    %v297 = vpop.xlane.xlu0 %296
    %v298 = vsel %vm159, %v130, -inf
    %299 = vmax.xlane.f32.xlu0 %v298
    %v300 = vpop.xlane.xlu0 %299
    %v301 = vsel %vm159, %v131, -inf
    %302 = vmax.xlane.f32.xlu0 %v301
    %v303 = vpop.xlane.xlu0 %302
    %v304 = vsel %vm159, %v132, -inf
    %305 = vmax.xlane.f32.xlu0 %v304
    %v306 = vpop.xlane.xlu0 %305
    %v307 = vsel %vm159, %v133, -inf
    %308 = vmax.xlane.f32.xlu0 %v307
    %v309 = vpop.xlane.xlu0 %308
    %v310 = vsel %vm159, %v134, -inf
    %311 = vmax.xlane.f32.xlu0 %v310
    %v312 = vpop.xlane.xlu0 %311
    %v313 = vsel %vm159, %v135, -inf
    %314 = vmax.xlane.f32.xlu0 %v313
    %v315 = vpop.xlane.xlu0 %314
    %v316 = vsel %vm159, %v136, -inf
    %317 = vmax.xlane.f32.xlu0 %v316
    %v318 = vpop.xlane.xlu0 %317
    %v319 = vsel %vm159, %v137, -inf
    %320 = vmax.xlane.f32.xlu0 %v319
    %v321 = vpop.xlane.xlu0 %320
    %v322 = vsel %vm159, %v138, -inf
    %323 = vmax.xlane.f32.xlu0 %v322
    %v324 = vpop.xlane.xlu0 %323
    %v325 = vsel %vm159, %v139, -inf
    %326 = vmax.xlane.f32.xlu0 %v325
    %v327 = vpop.xlane.xlu0 %326
    %v328 = vsel %vm159, %v140, -inf
    %329 = vmax.xlane.f32.xlu0 %v328
    %v330 = vpop.xlane.xlu0 %329
    %v331 = vsel %vm159, %v141, -inf
    %332 = vmax.xlane.f32.xlu0 %v331
    %v333 = vpop.xlane.xlu0 %332
    %v334 = vsel %vm159, %v142, -inf
    %335 = vmax.xlane.f32.xlu0 %v334
    %v336 = vpop.xlane.xlu0 %335
    %v337 = vsel %vm159, %v143, -inf
    %338 = vmax.xlane.f32.xlu0 %v337
    %v339 = vpop.xlane.xlu0 %338
    %v340 = vsel %vm159, %v144, -inf
    %341 = vmax.xlane.f32.xlu0 %v340
    %v342 = vpop.xlane.xlu0 %341
    %v343 = vsel %vm159, %v145, -inf
    %344 = vmax.xlane.f32.xlu0 %v343
    %v345 = vpop.xlane.xlu0 %344
    %v346 = vsel %vm159, %v146, -inf
    %347 = vmax.xlane.f32.xlu0 %v346
    %v348 = vpop.xlane.xlu0 %347
    %v349 = vsel %vm159, %v147, -inf
    %350 = vmax.xlane.f32.xlu0 %v349
    %v351 = vpop.xlane.xlu0 %350
    %v352 = vsel %vm159, %v148, -inf
    %353 = vmax.xlane.f32.xlu0 %v352
    %v354 = vpop.xlane.xlu0 %353
    %v355 = vsel %vm159, %v149, -inf
    %356 = vmax.xlane.f32.xlu0 %v355
    %v357 = vpop.xlane.xlu0 %356
    %v358 = vsel %vm159, %v150, -inf
    %359 = vmax.xlane.f32.xlu0 %v358
    %v360 = vpop.xlane.xlu0 %359
    %v361 = vsel %vm159, %v151, -inf
    %362 = vmax.xlane.f32.xlu0 %v361
    %v363 = vpop.xlane.xlu0 %362
    %v364 = vsel %vm159, %v152, -inf
    %365 = vmax.xlane.f32.xlu0 %v364
    %v366 = vpop.xlane.xlu0 %365
    %v367 = vsel %vm159, %v153, -inf
    %368 = vmax.xlane.f32.xlu0 %v367
    %v369 = vpop.xlane.xlu0 %368
    %v370 = vsel %vm159, %v154, -inf
    %371 = vmax.xlane.f32.xlu0 %v370
    %v372 = vpop.xlane.xlu0 %371
    %v373 = vsel %vm159, %v155, -inf
    %374 = vmax.xlane.f32.xlu0 %v373
    %v375 = vpop.xlane.xlu0 %374
    %v376 = vsel %vm159, %v156, -inf
    %377 = vmax.xlane.f32.xlu0 %v376
    %v378 = vpop.xlane.xlu0 %377
    %v379 = vsel %vm159, %v157, -inf
    %380 = vmax.xlane.f32.xlu0 %v379
    %v381 = vpop.xlane.xlu0 %380
    %v382 = vsel %vm159, %v158, -inf
    %383 = vmax.xlane.f32.xlu0 %v382
    %v384 = vpop.xlane.xlu0 %383
    %v385 = vsub.f32 %v84, %v162
    %v386 = vsub.f32 %v85, %v165
    %v387 = vsub.f32 %v86, %v168
    %v388 = vsub.f32 %v87, %v171
    %v389 = vsub.f32 %v88, %v174
    %v390 = vsub.f32 %v89, %v177
    %v391 = vsub.f32 %v90, %v180
    %v392 = vsub.f32 %v91, %v183
    %v393 = vsub.f32 %v92, %v186
    %v394 = vsub.f32 %v93, %v189
    %v395 = vsub.f32 %v94, %v192
    %v396 = vsub.f32 %v95, %v195
    %v397 = vsub.f32 %v96, %v198
    %v398 = vsub.f32 %v97, %v201
    %v399 = vsub.f32 %v98, %v204
    %v400 = vsub.f32 %v99, %v207
    %v401 = vsub.f32 %v100, %v210
    %v402 = vsub.f32 %v101, %v213
    %v403 = vsub.f32 %v102, %v216
    %v404 = vsub.f32 %v103, %v219
    %v405 = vsub.f32 %v104, %v222
    %v406 = vsub.f32 %v105, %v225
    %v407 = vsub.f32 %v106, %v228
    %v408 = vsub.f32 %v107, %v231
    %v409 = vsub.f32 %v108, %v234
    %v410 = vsub.f32 %v109, %v237
    %v411 = vsub.f32 %v110, %v240
    %v412 = vsub.f32 %v111, %v243
    %v413 = vsub.f32 %v112, %v246
    %v414 = vsub.f32 %v113, %v249
    %v415 = vsub.f32 %v114, %v252
    %v416 = vsub.f32 %v115, %v255
    %v417 = vsub.f32 %v116, %v258
    %v418 = vsub.f32 %v117, %v261
    %v419 = vsub.f32 %v118, %v264
    %v420 = vsub.f32 %v119, %v267
    %v421 = vsub.f32 %v120, %v270
    %v422 = vsub.f32 %v121, %v273
    %v423 = vsub.f32 %v122, %v276
    %v424 = vsub.f32 %v123, %v279
    %v425 = vsub.f32 %v124, %v282
    %v426 = vsub.f32 %v125, %v285
    %v427 = vsub.f32 %v126, %v288
    %v428 = vsub.f32 %v127, %v291
    %v429 = vsub.f32 %v128, %v294
    %v430 = vsub.f32 %v129, %v297
    %v431 = vsub.f32 %v130, %v300
    %v432 = vsub.f32 %v131, %v303
    %v433 = vsub.f32 %v132, %v306
    %v434 = vsub.f32 %v133, %v309
    %v435 = vsub.f32 %v134, %v312
    %v436 = vsub.f32 %v135, %v315
    %v437 = vsub.f32 %v136, %v318
    %v438 = vsub.f32 %v137, %v321
    %v439 = vsub.f32 %v138, %v324
    %v440 = vsub.f32 %v139, %v327
    %v441 = vsub.f32 %v140, %v330
    %v442 = vsub.f32 %v141, %v333
    %v443 = vsub.f32 %v142, %v336
    %v444 = vsub.f32 %v143, %v339
    %v445 = vsub.f32 %v144, %v342
    %v446 = vsub.f32 %v145, %v345
    %v447 = vsub.f32 %v146, %v348
    %v448 = vsub.f32 %v147, %v351
    %v449 = vsub.f32 %v148, %v354
    %v450 = vsub.f32 %v149, %v357
    %v451 = vsub.f32 %v150, %v360
    %v452 = vsub.f32 %v151, %v363
    %v453 = vsub.f32 %v152, %v366
    %v454 = vsub.f32 %v153, %v369
    %v455 = vsub.f32 %v154, %v372
    %v456 = vsub.f32 %v155, %v375
    %v457 = vsub.f32 %v156, %v378
    %v458 = vsub.f32 %v157, %v381
    %v459 = vsub.f32 %v158, %v384
    %v460 = vmul.f32 %v385, 1.442695
    %v461 = vpow.pop %v460
    %v462 = vmul.f32 %v386, 1.442695
    %v463 = vpow.pop %v462
    %v464 = vmul.f32 %v387, 1.442695
    %v465 = vpow.pop %v464
    %v466 = vmul.f32 %v388, 1.442695
    %v467 = vpow.pop %v466
    %v468 = vmul.f32 %v389, 1.442695
    %v469 = vpow.pop %v468
    %v470 = vmul.f32 %v390, 1.442695
    %v471 = vpow.pop %v470
    %v472 = vmul.f32 %v391, 1.442695
    %v473 = vpow.pop %v472
    %v474 = vmul.f32 %v392, 1.442695
    %v475 = vpow.pop %v474
    %v476 = vmul.f32 %v393, 1.442695
    %v477 = vpow.pop %v476
    %v478 = vmul.f32 %v394, 1.442695
    %v479 = vpow.pop %v478
    %v480 = vmul.f32 %v395, 1.442695
    %v481 = vpow.pop %v480
    %v482 = vmul.f32 %v396, 1.442695
    %v483 = vpow.pop %v482
    %v484 = vmul.f32 %v397, 1.442695
    %v485 = vpow.pop %v484
    %v486 = vmul.f32 %v398, 1.442695
    %v487 = vpow.pop %v486
    %v488 = vmul.f32 %v399, 1.442695
    %v489 = vpow.pop %v488
    %v490 = vmul.f32 %v400, 1.442695
    %v491 = vpow.pop %v490
    %v492 = vmul.f32 %v401, 1.442695
    %v493 = vpow.pop %v492
    %v494 = vmul.f32 %v402, 1.442695
    %v495 = vpow.pop %v494
    %v496 = vmul.f32 %v403, 1.442695
    %v497 = vpow.pop %v496
    %v498 = vmul.f32 %v404, 1.442695
    %v499 = vpow.pop %v498
    %v500 = vmul.f32 %v405, 1.442695
    %v501 = vpow.pop %v500
    %v502 = vmul.f32 %v406, 1.442695
    %v503 = vpow.pop %v502
    %v504 = vmul.f32 %v407, 1.442695
    %v505 = vpow.pop %v504
    %v506 = vmul.f32 %v408, 1.442695
    %v507 = vpow.pop %v506
    %v508 = vmul.f32 %v409, 1.442695
    %v509 = vpow.pop %v508
    %v510 = vmul.f32 %v410, 1.442695
    %v511 = vpow.pop %v510
    %v512 = vmul.f32 %v411, 1.442695
    %v513 = vpow.pop %v512
    %v514 = vmul.f32 %v412, 1.442695
    %v515 = vpow.pop %v514
    %v516 = vmul.f32 %v413, 1.442695
    %v517 = vpow.pop %v516
    %v518 = vmul.f32 %v414, 1.442695
    %v519 = vpow.pop %v518
    %v520 = vmul.f32 %v415, 1.442695
    %v521 = vpow.pop %v520
    %v522 = vmul.f32 %v416, 1.442695
    %v523 = vpow.pop %v522
    %v524 = vmul.f32 %v417, 1.442695
    %v525 = vpow.pop %v524
    %v526 = vmul.f32 %v418, 1.442695
    %v527 = vpow.pop %v526
    %v528 = vmul.f32 %v419, 1.442695
    %v529 = vpow.pop %v528
    %v530 = vmul.f32 %v420, 1.442695
    %v531 = vpow.pop %v530
    %v532 = vmul.f32 %v421, 1.442695
    %v533 = vpow.pop %v532
    %v534 = vmul.f32 %v422, 1.442695
    %v535 = vpow.pop %v534
    %v536 = vmul.f32 %v423, 1.442695
    %v537 = vpow.pop %v536
    %v538 = vmul.f32 %v424, 1.442695
    %v539 = vpow.pop %v538
    %v540 = vmul.f32 %v425, 1.442695
    %v541 = vpow.pop %v540
    %v542 = vmul.f32 %v426, 1.442695
    %v543 = vpow.pop %v542
    %v544 = vmul.f32 %v427, 1.442695
    %v545 = vpow.pop %v544
    %v546 = vmul.f32 %v428, 1.442695
    %v547 = vpow.pop %v546
    %v548 = vmul.f32 %v429, 1.442695
    %v549 = vpow.pop %v548
    %v550 = vmul.f32 %v430, 1.442695
    %v551 = vpow.pop %v550
    %v552 = vmul.f32 %v431, 1.442695
    %v553 = vpow.pop %v552
    %v554 = vmul.f32 %v432, 1.442695
    %v555 = vpow.pop %v554
    %v556 = vmul.f32 %v433, 1.442695
    %v557 = vpow.pop %v556
    %v558 = vmul.f32 %v434, 1.442695
    %v559 = vpow.pop %v558
    %v560 = vmul.f32 %v435, 1.442695
    %v561 = vpow.pop %v560
    %v562 = vmul.f32 %v436, 1.442695
    %v563 = vpow.pop %v562
    %v564 = vmul.f32 %v437, 1.442695
    %v565 = vpow.pop %v564
    %v566 = vmul.f32 %v438, 1.442695
    %v567 = vpow.pop %v566
    %v568 = vmul.f32 %v439, 1.442695
    %v569 = vpow.pop %v568
    %v570 = vmul.f32 %v440, 1.442695
    %v571 = vpow.pop %v570
    %v572 = vmul.f32 %v441, 1.442695
    %v573 = vpow.pop %v572
    %v574 = vmul.f32 %v442, 1.442695
    %v575 = vpow.pop %v574
    %v576 = vmul.f32 %v443, 1.442695
    %v577 = vpow.pop %v576
    %v578 = vmul.f32 %v444, 1.442695
    %v579 = vpow.pop %v578
    %v580 = vmul.f32 %v445, 1.442695
    %v581 = vpow.pop %v580
    %v582 = vmul.f32 %v446, 1.442695
    %v583 = vpow.pop %v582
    %v584 = vmul.f32 %v447, 1.442695
    %v585 = vpow.pop %v584
    %v586 = vmul.f32 %v448, 1.442695
    %v587 = vpow.pop %v586
    %v588 = vmul.f32 %v449, 1.442695
    %v589 = vpow.pop %v588
    %v590 = vmul.f32 %v450, 1.442695
    %v591 = vpow.pop %v590
    %v592 = vmul.f32 %v451, 1.442695
    %v593 = vpow.pop %v592
    %v594 = vmul.f32 %v452, 1.442695
    %v595 = vpow.pop %v594
    %v596 = vmul.f32 %v453, 1.442695
    %v597 = vpow.pop %v596
    %v598 = vmul.f32 %v454, 1.442695
    %v599 = vpow.pop %v598
    %v600 = vmul.f32 %v455, 1.442695
    %v601 = vpow.pop %v600
    %v602 = vmul.f32 %v456, 1.442695
    %v603 = vpow.pop %v602
    %v604 = vmul.f32 %v457, 1.442695
    %v605 = vpow.pop %v604
    %v606 = vmul.f32 %v458, 1.442695
    %v607 = vpow.pop %v606
    %v608 = vmul.f32 %v459, 1.442695
    %v609 = vpow.pop %v608
    %v610 = vsel %vm159, %v461, 0.0
    %611 = vadd.xlane.f32.xlu0 %v610
    %v612 = vpop.xlane.xlu0 %611
    %v613 = vsel %vm159, %v463, 0.0
    %614 = vadd.xlane.f32.xlu0 %v613
    %v615 = vpop.xlane.xlu0 %614
    %v616 = vsel %vm159, %v465, 0.0
    %617 = vadd.xlane.f32.xlu0 %v616
    %v618 = vpop.xlane.xlu0 %617
    %v619 = vsel %vm159, %v467, 0.0
    %620 = vadd.xlane.f32.xlu0 %v619
    %v621 = vpop.xlane.xlu0 %620
    %v622 = vsel %vm159, %v469, 0.0
    %623 = vadd.xlane.f32.xlu0 %v622
    %v624 = vpop.xlane.xlu0 %623
    %v625 = vsel %vm159, %v471, 0.0
    %626 = vadd.xlane.f32.xlu0 %v625
    %v627 = vpop.xlane.xlu0 %626
    %v628 = vsel %vm159, %v473, 0.0
    %629 = vadd.xlane.f32.xlu0 %v628
    %v630 = vpop.xlane.xlu0 %629
    %v631 = vsel %vm159, %v475, 0.0
    %632 = vadd.xlane.f32.xlu0 %v631
    %v633 = vpop.xlane.xlu0 %632
    %v634 = vsel %vm159, %v477, 0.0
    %635 = vadd.xlane.f32.xlu0 %v634
    %v636 = vpop.xlane.xlu0 %635
    %v637 = vsel %vm159, %v479, 0.0
    %638 = vadd.xlane.f32.xlu0 %v637
    %v639 = vpop.xlane.xlu0 %638
    %v640 = vsel %vm159, %v481, 0.0
    %641 = vadd.xlane.f32.xlu0 %v640
    %v642 = vpop.xlane.xlu0 %641
    %v643 = vsel %vm159, %v483, 0.0
    %644 = vadd.xlane.f32.xlu0 %v643
    %v645 = vpop.xlane.xlu0 %644
    %v646 = vsel %vm159, %v485, 0.0
    %647 = vadd.xlane.f32.xlu0 %v646
    %v648 = vpop.xlane.xlu0 %647
    %v649 = vsel %vm159, %v487, 0.0
    %650 = vadd.xlane.f32.xlu0 %v649
    %v651 = vpop.xlane.xlu0 %650
    %v652 = vsel %vm159, %v489, 0.0
    %653 = vadd.xlane.f32.xlu0 %v652
    %v654 = vpop.xlane.xlu0 %653
    %v655 = vsel %vm159, %v491, 0.0
    %656 = vadd.xlane.f32.xlu0 %v655
    %v657 = vpop.xlane.xlu0 %656
    %v658 = vsel %vm159, %v493, 0.0
    %659 = vadd.xlane.f32.xlu0 %v658
    %v660 = vpop.xlane.xlu0 %659
    %v661 = vsel %vm159, %v495, 0.0
    %662 = vadd.xlane.f32.xlu0 %v661
    %v663 = vpop.xlane.xlu0 %662
    %v664 = vsel %vm159, %v497, 0.0
    %665 = vadd.xlane.f32.xlu0 %v664
    %v666 = vpop.xlane.xlu0 %665
    %v667 = vsel %vm159, %v499, 0.0
    %668 = vadd.xlane.f32.xlu0 %v667
    %v669 = vpop.xlane.xlu0 %668
    %v670 = vsel %vm159, %v501, 0.0
    %671 = vadd.xlane.f32.xlu0 %v670
    %v672 = vpop.xlane.xlu0 %671
    %v673 = vsel %vm159, %v503, 0.0
    %674 = vadd.xlane.f32.xlu0 %v673
    %v675 = vpop.xlane.xlu0 %674
    %v676 = vsel %vm159, %v505, 0.0
    %677 = vadd.xlane.f32.xlu0 %v676
    %v678 = vpop.xlane.xlu0 %677
    %v679 = vsel %vm159, %v507, 0.0
    %680 = vadd.xlane.f32.xlu0 %v679
    %v681 = vpop.xlane.xlu0 %680
    %v682 = vsel %vm159, %v509, 0.0
    %683 = vadd.xlane.f32.xlu0 %v682
    %v684 = vpop.xlane.xlu0 %683
    %v685 = vsel %vm159, %v511, 0.0
    %686 = vadd.xlane.f32.xlu0 %v685
    %v687 = vpop.xlane.xlu0 %686
    %v688 = vsel %vm159, %v513, 0.0
    %689 = vadd.xlane.f32.xlu0 %v688
    %v690 = vpop.xlane.xlu0 %689
    %v691 = vsel %vm159, %v515, 0.0
    %692 = vadd.xlane.f32.xlu0 %v691
    %v693 = vpop.xlane.xlu0 %692
    %v694 = vsel %vm159, %v517, 0.0
    %695 = vadd.xlane.f32.xlu0 %v694
    %v696 = vpop.xlane.xlu0 %695
    %v697 = vsel %vm159, %v519, 0.0
    %698 = vadd.xlane.f32.xlu0 %v697
    %v699 = vpop.xlane.xlu0 %698
    %v700 = vsel %vm159, %v521, 0.0
    %701 = vadd.xlane.f32.xlu0 %v700
    %v702 = vpop.xlane.xlu0 %701
    %v703 = vsel %vm159, %v523, 0.0
    %704 = vadd.xlane.f32.xlu0 %v703
    %v705 = vpop.xlane.xlu0 %704
    %v706 = vsel %vm159, %v525, 0.0
    %707 = vadd.xlane.f32.xlu0 %v706
    %v708 = vpop.xlane.xlu0 %707
    %v709 = vsel %vm159, %v527, 0.0
    %710 = vadd.xlane.f32.xlu0 %v709
    %v711 = vpop.xlane.xlu0 %710
    %v712 = vsel %vm159, %v529, 0.0
    %713 = vadd.xlane.f32.xlu0 %v712
    %v714 = vpop.xlane.xlu0 %713
    %v715 = vsel %vm159, %v531, 0.0
    %716 = vadd.xlane.f32.xlu0 %v715
    %v717 = vpop.xlane.xlu0 %716
    %v718 = vsel %vm159, %v533, 0.0
    %719 = vadd.xlane.f32.xlu0 %v718
    %v720 = vpop.xlane.xlu0 %719
    %v721 = vsel %vm159, %v535, 0.0
    %722 = vadd.xlane.f32.xlu0 %v721
    %v723 = vpop.xlane.xlu0 %722
    %v724 = vsel %vm159, %v537, 0.0
    %725 = vadd.xlane.f32.xlu0 %v724
    %v726 = vpop.xlane.xlu0 %725
    %v727 = vsel %vm159, %v539, 0.0
    %728 = vadd.xlane.f32.xlu0 %v727
    %v729 = vpop.xlane.xlu0 %728
    %v730 = vsel %vm159, %v541, 0.0
    %731 = vadd.xlane.f32.xlu0 %v730
    %v732 = vpop.xlane.xlu0 %731
    %v733 = vsel %vm159, %v543, 0.0
    %734 = vadd.xlane.f32.xlu0 %v733
    %v735 = vpop.xlane.xlu0 %734
    %v736 = vsel %vm159, %v545, 0.0
    %737 = vadd.xlane.f32.xlu0 %v736
    %v738 = vpop.xlane.xlu0 %737
    %v739 = vsel %vm159, %v547, 0.0
    %740 = vadd.xlane.f32.xlu0 %v739
    %v741 = vpop.xlane.xlu0 %740
    %v742 = vsel %vm159, %v549, 0.0
    %743 = vadd.xlane.f32.xlu0 %v742
    %v744 = vpop.xlane.xlu0 %743
    %v745 = vsel %vm159, %v551, 0.0
    %746 = vadd.xlane.f32.xlu0 %v745
    %v747 = vpop.xlane.xlu0 %746
    %v748 = vsel %vm159, %v553, 0.0
    %749 = vadd.xlane.f32.xlu0 %v748
    %v750 = vpop.xlane.xlu0 %749
    %v751 = vsel %vm159, %v555, 0.0
    %752 = vadd.xlane.f32.xlu0 %v751
    %v753 = vpop.xlane.xlu0 %752
    %v754 = vsel %vm159, %v557, 0.0
    %755 = vadd.xlane.f32.xlu0 %v754
    %v756 = vpop.xlane.xlu0 %755
    %v757 = vsel %vm159, %v559, 0.0
    %758 = vadd.xlane.f32.xlu0 %v757
    %v759 = vpop.xlane.xlu0 %758
    %v760 = vsel %vm159, %v561, 0.0
    %761 = vadd.xlane.f32.xlu0 %v760
    %v762 = vpop.xlane.xlu0 %761
    %v763 = vsel %vm159, %v563, 0.0
    %764 = vadd.xlane.f32.xlu0 %v763
    %v765 = vpop.xlane.xlu0 %764
    %v766 = vsel %vm159, %v565, 0.0
    %767 = vadd.xlane.f32.xlu0 %v766
    %v768 = vpop.xlane.xlu0 %767
    %v769 = vsel %vm159, %v567, 0.0
    %770 = vadd.xlane.f32.xlu0 %v769
    %v771 = vpop.xlane.xlu0 %770
    %v772 = vsel %vm159, %v569, 0.0
    %773 = vadd.xlane.f32.xlu0 %v772
    %v774 = vpop.xlane.xlu0 %773
    %v775 = vsel %vm159, %v571, 0.0
    %776 = vadd.xlane.f32.xlu0 %v775
    %v777 = vpop.xlane.xlu0 %776
    %v778 = vsel %vm159, %v573, 0.0
    %779 = vadd.xlane.f32.xlu0 %v778
    %v780 = vpop.xlane.xlu0 %779
    %v781 = vsel %vm159, %v575, 0.0
    %782 = vadd.xlane.f32.xlu0 %v781
    %v783 = vpop.xlane.xlu0 %782
    %v784 = vsel %vm159, %v577, 0.0
    %785 = vadd.xlane.f32.xlu0 %v784
    %v786 = vpop.xlane.xlu0 %785
    %v787 = vsel %vm159, %v579, 0.0
    %788 = vadd.xlane.f32.xlu0 %v787
    %v789 = vpop.xlane.xlu0 %788
    %v790 = vsel %vm159, %v581, 0.0
    %791 = vadd.xlane.f32.xlu0 %v790
    %v792 = vpop.xlane.xlu0 %791
    %v793 = vsel %vm159, %v583, 0.0
    %794 = vadd.xlane.f32.xlu0 %v793
    %v795 = vpop.xlane.xlu0 %794
    %v796 = vsel %vm159, %v585, 0.0
    %797 = vadd.xlane.f32.xlu0 %v796
    %v798 = vpop.xlane.xlu0 %797
    %v799 = vsel %vm159, %v587, 0.0
    %800 = vadd.xlane.f32.xlu0 %v799
    %v801 = vpop.xlane.xlu0 %800
    %v802 = vsel %vm159, %v589, 0.0
    %803 = vadd.xlane.f32.xlu0 %v802
    %v804 = vpop.xlane.xlu0 %803
    %v805 = vsel %vm159, %v591, 0.0
    %806 = vadd.xlane.f32.xlu0 %v805
    %v807 = vpop.xlane.xlu0 %806
    %v808 = vsel %vm159, %v593, 0.0
    %809 = vadd.xlane.f32.xlu0 %v808
    %v810 = vpop.xlane.xlu0 %809
    %v811 = vsel %vm159, %v595, 0.0
    %812 = vadd.xlane.f32.xlu0 %v811
    %v813 = vpop.xlane.xlu0 %812
    %v814 = vsel %vm159, %v597, 0.0
    %815 = vadd.xlane.f32.xlu0 %v814
    %v816 = vpop.xlane.xlu0 %815
    %v817 = vsel %vm159, %v599, 0.0
    %818 = vadd.xlane.f32.xlu0 %v817
    %v819 = vpop.xlane.xlu0 %818
    %v820 = vsel %vm159, %v601, 0.0
    %821 = vadd.xlane.f32.xlu0 %v820
    %v822 = vpop.xlane.xlu0 %821
    %v823 = vsel %vm159, %v603, 0.0
    %824 = vadd.xlane.f32.xlu0 %v823
    %v825 = vpop.xlane.xlu0 %824
    %v826 = vsel %vm159, %v605, 0.0
    %827 = vadd.xlane.f32.xlu0 %v826
    %v828 = vpop.xlane.xlu0 %827
    %v829 = vsel %vm159, %v607, 0.0
    %830 = vadd.xlane.f32.xlu0 %v829
    %v831 = vpop.xlane.xlu0 %830
    %v832 = vsel %vm159, %v609, 0.0
    %833 = vadd.xlane.f32.xlu0 %v832
    %v834 = vpop.xlane.xlu0 %833
    %v835 = vrcp.pop %v612
    %v836 = vmul.f32 %v461, %v835
    %v837 = vrcp.pop %v615
    %v838 = vmul.f32 %v463, %v837
    %v839 = vrcp.pop %v618
    %v840 = vmul.f32 %v465, %v839
    %v841 = vrcp.pop %v621
    %v842 = vmul.f32 %v467, %v841
    %v843 = vrcp.pop %v624
    %v844 = vmul.f32 %v469, %v843
    %v845 = vrcp.pop %v627
    %v846 = vmul.f32 %v471, %v845
    %v847 = vrcp.pop %v630
    %v848 = vmul.f32 %v473, %v847
    %v849 = vrcp.pop %v633
    %v850 = vmul.f32 %v475, %v849
    %v851 = vrcp.pop %v636
    %v852 = vmul.f32 %v477, %v851
    %v853 = vrcp.pop %v639
    %v854 = vmul.f32 %v479, %v853
    %v855 = vrcp.pop %v642
    %v856 = vmul.f32 %v481, %v855
    %v857 = vrcp.pop %v645
    %v858 = vmul.f32 %v483, %v857
    %v859 = vrcp.pop %v648
    %v860 = vmul.f32 %v485, %v859
    %v861 = vrcp.pop %v651
    %v862 = vmul.f32 %v487, %v861
    %v863 = vrcp.pop %v654
    %v864 = vmul.f32 %v489, %v863
    %v865 = vrcp.pop %v657
    %v866 = vmul.f32 %v491, %v865
    %v867 = vrcp.pop %v660
    %v868 = vmul.f32 %v493, %v867
    %v869 = vrcp.pop %v663
    %v870 = vmul.f32 %v495, %v869
    %v871 = vrcp.pop %v666
    %v872 = vmul.f32 %v497, %v871
    %v873 = vrcp.pop %v669
    %v874 = vmul.f32 %v499, %v873
    %v875 = vrcp.pop %v672
    %v876 = vmul.f32 %v501, %v875
    %v877 = vrcp.pop %v675
    %v878 = vmul.f32 %v503, %v877
    %v879 = vrcp.pop %v678
    %v880 = vmul.f32 %v505, %v879
    %v881 = vrcp.pop %v681
    %v882 = vmul.f32 %v507, %v881
    %v883 = vrcp.pop %v684
    %v884 = vmul.f32 %v509, %v883
    %v885 = vrcp.pop %v687
    %v886 = vmul.f32 %v511, %v885
    %v887 = vrcp.pop %v690
    %v888 = vmul.f32 %v513, %v887
    %v889 = vrcp.pop %v693
    %v890 = vmul.f32 %v515, %v889
    %v891 = vrcp.pop %v696
    %v892 = vmul.f32 %v517, %v891
    %v893 = vrcp.pop %v699
    %v894 = vmul.f32 %v519, %v893
    %v895 = vrcp.pop %v702
    %v896 = vmul.f32 %v521, %v895
    %v897 = vrcp.pop %v705
    %v898 = vmul.f32 %v523, %v897
    %v899 = vrcp.pop %v708
    %v900 = vmul.f32 %v525, %v899
    %v901 = vrcp.pop %v711
    %v902 = vmul.f32 %v527, %v901
    %v903 = vrcp.pop %v714
    %v904 = vmul.f32 %v529, %v903
    %v905 = vrcp.pop %v717
    %v906 = vmul.f32 %v531, %v905
    %v907 = vrcp.pop %v720
    %v908 = vmul.f32 %v533, %v907
    %v909 = vrcp.pop %v723
    %v910 = vmul.f32 %v535, %v909
    %v911 = vrcp.pop %v726
    %v912 = vmul.f32 %v537, %v911
    %v913 = vrcp.pop %v729
    %v914 = vmul.f32 %v539, %v913
    %v915 = vrcp.pop %v732
    %v916 = vmul.f32 %v541, %v915
    %v917 = vrcp.pop %v735
    %v918 = vmul.f32 %v543, %v917
    %v919 = vrcp.pop %v738
    %v920 = vmul.f32 %v545, %v919
    %v921 = vrcp.pop %v741
    %v922 = vmul.f32 %v547, %v921
    %v923 = vrcp.pop %v744
    %v924 = vmul.f32 %v549, %v923
    %v925 = vrcp.pop %v747
    %v926 = vmul.f32 %v551, %v925
    %v927 = vrcp.pop %v750
    %v928 = vmul.f32 %v553, %v927
    %v929 = vrcp.pop %v753
    %v930 = vmul.f32 %v555, %v929
    %v931 = vrcp.pop %v756
    %v932 = vmul.f32 %v557, %v931
    %v933 = vrcp.pop %v759
    %v934 = vmul.f32 %v559, %v933
    %v935 = vrcp.pop %v762
    %v936 = vmul.f32 %v561, %v935
    %v937 = vrcp.pop %v765
    %v938 = vmul.f32 %v563, %v937
    %v939 = vrcp.pop %v768
    %v940 = vmul.f32 %v565, %v939
    %v941 = vrcp.pop %v771
    %v942 = vmul.f32 %v567, %v941
    %v943 = vrcp.pop %v774
    %v944 = vmul.f32 %v569, %v943
    %v945 = vrcp.pop %v777
    %v946 = vmul.f32 %v571, %v945
    %v947 = vrcp.pop %v780
    %v948 = vmul.f32 %v573, %v947
    %v949 = vrcp.pop %v783
    %v950 = vmul.f32 %v575, %v949
    %v951 = vrcp.pop %v786
    %v952 = vmul.f32 %v577, %v951
    %v953 = vrcp.pop %v789
    %v954 = vmul.f32 %v579, %v953
    %v955 = vrcp.pop %v792
    %v956 = vmul.f32 %v581, %v955
    %v957 = vrcp.pop %v795
    %v958 = vmul.f32 %v583, %v957
    %v959 = vrcp.pop %v798
    %v960 = vmul.f32 %v585, %v959
    %v961 = vrcp.pop %v801
    %v962 = vmul.f32 %v587, %v961
    %v963 = vrcp.pop %v804
    %v964 = vmul.f32 %v589, %v963
    %v965 = vrcp.pop %v807
    %v966 = vmul.f32 %v591, %v965
    %v967 = vrcp.pop %v810
    %v968 = vmul.f32 %v593, %v967
    %v969 = vrcp.pop %v813
    %v970 = vmul.f32 %v595, %v969
    %v971 = vrcp.pop %v816
    %v972 = vmul.f32 %v597, %v971
    %v973 = vrcp.pop %v819
    %v974 = vmul.f32 %v599, %v973
    %v975 = vrcp.pop %v822
    %v976 = vmul.f32 %v601, %v975
    %v977 = vrcp.pop %v825
    %v978 = vmul.f32 %v603, %v977
    %v979 = vrcp.pop %v828
    %v980 = vmul.f32 %v605, %v979
    %v981 = vrcp.pop %v831
    %v982 = vmul.f32 %v607, %v981
    %v983 = vrcp.pop %v834
    %v984 = vmul.f32 %v609, %v983
    %v985 = vadd.f32 %v836, 1e-05
    %v986 = vadd.f32 %v838, 1e-05
    %v987 = vadd.f32 %v840, 1e-05
    %v988 = vadd.f32 %v842, 1e-05
    %v989 = vadd.f32 %v844, 1e-05
    %v990 = vadd.f32 %v846, 1e-05
    %v991 = vadd.f32 %v848, 1e-05
    %v992 = vadd.f32 %v850, 1e-05
    %v993 = vadd.f32 %v852, 1e-05
    %v994 = vadd.f32 %v854, 1e-05
    %v995 = vadd.f32 %v856, 1e-05
    %v996 = vadd.f32 %v858, 1e-05
    %v997 = vadd.f32 %v860, 1e-05
    %v998 = vadd.f32 %v862, 1e-05
    %v999 = vadd.f32 %v864, 1e-05
    %v1000 = vadd.f32 %v866, 1e-05
    %v1001 = vadd.f32 %v868, 1e-05
    %v1002 = vadd.f32 %v870, 1e-05
    %v1003 = vadd.f32 %v872, 1e-05
    %v1004 = vadd.f32 %v874, 1e-05
    %v1005 = vadd.f32 %v876, 1e-05
    %v1006 = vadd.f32 %v878, 1e-05
    %v1007 = vadd.f32 %v880, 1e-05
    %v1008 = vadd.f32 %v882, 1e-05
    %v1009 = vadd.f32 %v884, 1e-05
    %v1010 = vadd.f32 %v886, 1e-05
    %v1011 = vadd.f32 %v888, 1e-05
    %v1012 = vadd.f32 %v890, 1e-05
    %v1013 = vadd.f32 %v892, 1e-05
    %v1014 = vadd.f32 %v894, 1e-05
    %v1015 = vadd.f32 %v896, 1e-05
    %v1016 = vadd.f32 %v898, 1e-05
    %v1017 = vadd.f32 %v900, 1e-05
    %v1018 = vadd.f32 %v902, 1e-05
    %v1019 = vadd.f32 %v904, 1e-05
    %v1020 = vadd.f32 %v906, 1e-05
    %v1021 = vadd.f32 %v908, 1e-05
    %v1022 = vadd.f32 %v910, 1e-05
    %v1023 = vadd.f32 %v912, 1e-05
    %v1024 = vadd.f32 %v914, 1e-05
    %v1025 = vadd.f32 %v916, 1e-05
    %v1026 = vadd.f32 %v918, 1e-05
    %v1027 = vadd.f32 %v920, 1e-05
    %v1028 = vadd.f32 %v922, 1e-05
    %v1029 = vadd.f32 %v924, 1e-05
    %v1030 = vadd.f32 %v926, 1e-05
    %v1031 = vadd.f32 %v928, 1e-05
    %v1032 = vadd.f32 %v930, 1e-05
    %v1033 = vadd.f32 %v932, 1e-05
    %v1034 = vadd.f32 %v934, 1e-05
    %v1035 = vadd.f32 %v936, 1e-05
    %v1036 = vadd.f32 %v938, 1e-05
    %v1037 = vadd.f32 %v940, 1e-05
    %v1038 = vadd.f32 %v942, 1e-05
    %v1039 = vadd.f32 %v944, 1e-05
    %v1040 = vadd.f32 %v946, 1e-05
    %v1041 = vadd.f32 %v948, 1e-05
    %v1042 = vadd.f32 %v950, 1e-05
    %v1043 = vadd.f32 %v952, 1e-05
    %v1044 = vadd.f32 %v954, 1e-05
    %v1045 = vadd.f32 %v956, 1e-05
    %v1046 = vadd.f32 %v958, 1e-05
    %v1047 = vadd.f32 %v960, 1e-05
    %v1048 = vadd.f32 %v962, 1e-05
    %v1049 = vadd.f32 %v964, 1e-05
    %v1050 = vadd.f32 %v966, 1e-05
    %v1051 = vadd.f32 %v968, 1e-05
    %v1052 = vadd.f32 %v970, 1e-05
    %v1053 = vadd.f32 %v972, 1e-05
    %v1054 = vadd.f32 %v974, 1e-05
    %v1055 = vadd.f32 %v976, 1e-05
    %v1056 = vadd.f32 %v978, 1e-05
    %v1057 = vadd.f32 %v980, 1e-05
    %v1058 = vadd.f32 %v982, 1e-05
    %v1059 = vadd.f32 %v984, 1e-05
    %v1060 = vlog2.pop %v985
    %v1061 = vmul.f32 %v1060, 0.6931472
    %v1062 = vlog2.pop %v986
    %v1063 = vmul.f32 %v1062, 0.6931472
    %v1064 = vlog2.pop %v987
    %v1065 = vmul.f32 %v1064, 0.6931472
    %v1066 = vlog2.pop %v988
    %v1067 = vmul.f32 %v1066, 0.6931472
    %v1068 = vlog2.pop %v989
    %v1069 = vmul.f32 %v1068, 0.6931472
    %v1070 = vlog2.pop %v990
    %v1071 = vmul.f32 %v1070, 0.6931472
    %v1072 = vlog2.pop %v991
    %v1073 = vmul.f32 %v1072, 0.6931472
    %v1074 = vlog2.pop %v992
    %v1075 = vmul.f32 %v1074, 0.6931472
    %v1076 = vlog2.pop %v993
    %v1077 = vmul.f32 %v1076, 0.6931472
    %v1078 = vlog2.pop %v994
    %v1079 = vmul.f32 %v1078, 0.6931472
    %v1080 = vlog2.pop %v995
    %v1081 = vmul.f32 %v1080, 0.6931472
    %v1082 = vlog2.pop %v996
    %v1083 = vmul.f32 %v1082, 0.6931472
    %v1084 = vlog2.pop %v997
    %v1085 = vmul.f32 %v1084, 0.6931472
    %v1086 = vlog2.pop %v998
    %v1087 = vmul.f32 %v1086, 0.6931472
    %v1088 = vlog2.pop %v999
    %v1089 = vmul.f32 %v1088, 0.6931472
    %v1090 = vlog2.pop %v1000
    %v1091 = vmul.f32 %v1090, 0.6931472
    %v1092 = vlog2.pop %v1001
    %v1093 = vmul.f32 %v1092, 0.6931472
    %v1094 = vlog2.pop %v1002
    %v1095 = vmul.f32 %v1094, 0.6931472
    %v1096 = vlog2.pop %v1003
    %v1097 = vmul.f32 %v1096, 0.6931472
    %v1098 = vlog2.pop %v1004
    %v1099 = vmul.f32 %v1098, 0.6931472
    %v1100 = vlog2.pop %v1005
    %v1101 = vmul.f32 %v1100, 0.6931472
    %v1102 = vlog2.pop %v1006
    %v1103 = vmul.f32 %v1102, 0.6931472
    %v1104 = vlog2.pop %v1007
    %v1105 = vmul.f32 %v1104, 0.6931472
    %v1106 = vlog2.pop %v1008
    %v1107 = vmul.f32 %v1106, 0.6931472
    %v1108 = vlog2.pop %v1009
    %v1109 = vmul.f32 %v1108, 0.6931472
    %v1110 = vlog2.pop %v1010
    %v1111 = vmul.f32 %v1110, 0.6931472
    %v1112 = vlog2.pop %v1011
    %v1113 = vmul.f32 %v1112, 0.6931472
    %v1114 = vlog2.pop %v1012
    %v1115 = vmul.f32 %v1114, 0.6931472
    %v1116 = vlog2.pop %v1013
    %v1117 = vmul.f32 %v1116, 0.6931472
    %v1118 = vlog2.pop %v1014
    %v1119 = vmul.f32 %v1118, 0.6931472
    %v1120 = vlog2.pop %v1015
    %v1121 = vmul.f32 %v1120, 0.6931472
    %v1122 = vlog2.pop %v1016
    %v1123 = vmul.f32 %v1122, 0.6931472
    %v1124 = vlog2.pop %v1017
    %v1125 = vmul.f32 %v1124, 0.6931472
    %v1126 = vlog2.pop %v1018
    %v1127 = vmul.f32 %v1126, 0.6931472
    %v1128 = vlog2.pop %v1019
    %v1129 = vmul.f32 %v1128, 0.6931472
    %v1130 = vlog2.pop %v1020
    %v1131 = vmul.f32 %v1130, 0.6931472
    %v1132 = vlog2.pop %v1021
    %v1133 = vmul.f32 %v1132, 0.6931472
    %v1134 = vlog2.pop %v1022
    %v1135 = vmul.f32 %v1134, 0.6931472
    %v1136 = vlog2.pop %v1023
    %v1137 = vmul.f32 %v1136, 0.6931472
    %v1138 = vlog2.pop %v1024
    %v1139 = vmul.f32 %v1138, 0.6931472
    %v1140 = vlog2.pop %v1025
    %v1141 = vmul.f32 %v1140, 0.6931472
    %v1142 = vlog2.pop %v1026
    %v1143 = vmul.f32 %v1142, 0.6931472
    %v1144 = vlog2.pop %v1027
    %v1145 = vmul.f32 %v1144, 0.6931472
    %v1146 = vlog2.pop %v1028
    %v1147 = vmul.f32 %v1146, 0.6931472
    %v1148 = vlog2.pop %v1029
    %v1149 = vmul.f32 %v1148, 0.6931472
    %v1150 = vlog2.pop %v1030
    %v1151 = vmul.f32 %v1150, 0.6931472
    %v1152 = vlog2.pop %v1031
    %v1153 = vmul.f32 %v1152, 0.6931472
    %v1154 = vlog2.pop %v1032
    %v1155 = vmul.f32 %v1154, 0.6931472
    %v1156 = vlog2.pop %v1033
    %v1157 = vmul.f32 %v1156, 0.6931472
    %v1158 = vlog2.pop %v1034
    %v1159 = vmul.f32 %v1158, 0.6931472
    %v1160 = vlog2.pop %v1035
    %v1161 = vmul.f32 %v1160, 0.6931472
    %v1162 = vlog2.pop %v1036
    %v1163 = vmul.f32 %v1162, 0.6931472
    %v1164 = vlog2.pop %v1037
    %v1165 = vmul.f32 %v1164, 0.6931472
    %v1166 = vlog2.pop %v1038
    %v1167 = vmul.f32 %v1166, 0.6931472
    %v1168 = vlog2.pop %v1039
    %v1169 = vmul.f32 %v1168, 0.6931472
    %v1170 = vlog2.pop %v1040
    %v1171 = vmul.f32 %v1170, 0.6931472
    %v1172 = vlog2.pop %v1041
    %v1173 = vmul.f32 %v1172, 0.6931472
    %v1174 = vlog2.pop %v1042
    %v1175 = vmul.f32 %v1174, 0.6931472
    %v1176 = vlog2.pop %v1043
    %v1177 = vmul.f32 %v1176, 0.6931472
    %v1178 = vlog2.pop %v1044
    %v1179 = vmul.f32 %v1178, 0.6931472
    %v1180 = vlog2.pop %v1045
    %v1181 = vmul.f32 %v1180, 0.6931472
    %v1182 = vlog2.pop %v1046
    %v1183 = vmul.f32 %v1182, 0.6931472
    %v1184 = vlog2.pop %v1047
    %v1185 = vmul.f32 %v1184, 0.6931472
    %v1186 = vlog2.pop %v1048
    %v1187 = vmul.f32 %v1186, 0.6931472
    %v1188 = vlog2.pop %v1049
    %v1189 = vmul.f32 %v1188, 0.6931472
    %v1190 = vlog2.pop %v1050
    %v1191 = vmul.f32 %v1190, 0.6931472
    %v1192 = vlog2.pop %v1051
    %v1193 = vmul.f32 %v1192, 0.6931472
    %v1194 = vlog2.pop %v1052
    %v1195 = vmul.f32 %v1194, 0.6931472
    %v1196 = vlog2.pop %v1053
    %v1197 = vmul.f32 %v1196, 0.6931472
    %v1198 = vlog2.pop %v1054
    %v1199 = vmul.f32 %v1198, 0.6931472
    %v1200 = vlog2.pop %v1055
    %v1201 = vmul.f32 %v1200, 0.6931472
    %v1202 = vlog2.pop %v1056
    %v1203 = vmul.f32 %v1202, 0.6931472
    %v1204 = vlog2.pop %v1057
    %v1205 = vmul.f32 %v1204, 0.6931472
    %v1206 = vlog2.pop %v1058
    %v1207 = vmul.f32 %v1206, 0.6931472
    %v1208 = vlog2.pop %v1059
    %v1209 = vmul.f32 %v1208, 0.6931472
    %v1210 = vmul.f32 %v836, %v1061
    %v1211 = vmul.f32 %v838, %v1063
    %v1212 = vmul.f32 %v840, %v1065
    %v1213 = vmul.f32 %v842, %v1067
    %v1214 = vmul.f32 %v844, %v1069
    %v1215 = vmul.f32 %v846, %v1071
    %v1216 = vmul.f32 %v848, %v1073
    %v1217 = vmul.f32 %v850, %v1075
    %v1218 = vmul.f32 %v852, %v1077
    %v1219 = vmul.f32 %v854, %v1079
    %v1220 = vmul.f32 %v856, %v1081
    %v1221 = vmul.f32 %v858, %v1083
    %v1222 = vmul.f32 %v860, %v1085
    %v1223 = vmul.f32 %v862, %v1087
    %v1224 = vmul.f32 %v864, %v1089
    %v1225 = vmul.f32 %v866, %v1091
    %v1226 = vmul.f32 %v868, %v1093
    %v1227 = vmul.f32 %v870, %v1095
    %v1228 = vmul.f32 %v872, %v1097
    %v1229 = vmul.f32 %v874, %v1099
    %v1230 = vmul.f32 %v876, %v1101
    %v1231 = vmul.f32 %v878, %v1103
    %v1232 = vmul.f32 %v880, %v1105
    %v1233 = vmul.f32 %v882, %v1107
    %v1234 = vmul.f32 %v884, %v1109
    %v1235 = vmul.f32 %v886, %v1111
    %v1236 = vmul.f32 %v888, %v1113
    %v1237 = vmul.f32 %v890, %v1115
    %v1238 = vmul.f32 %v892, %v1117
    %v1239 = vmul.f32 %v894, %v1119
    %v1240 = vmul.f32 %v896, %v1121
    %v1241 = vmul.f32 %v898, %v1123
    %v1242 = vmul.f32 %v900, %v1125
    %v1243 = vmul.f32 %v902, %v1127
    %v1244 = vmul.f32 %v904, %v1129
    %v1245 = vmul.f32 %v906, %v1131
    %v1246 = vmul.f32 %v908, %v1133
    %v1247 = vmul.f32 %v910, %v1135
    %v1248 = vmul.f32 %v912, %v1137
    %v1249 = vmul.f32 %v914, %v1139
    %v1250 = vmul.f32 %v916, %v1141
    %v1251 = vmul.f32 %v918, %v1143
    %v1252 = vmul.f32 %v920, %v1145
    %v1253 = vmul.f32 %v922, %v1147
    %v1254 = vmul.f32 %v924, %v1149
    %v1255 = vmul.f32 %v926, %v1151
    %v1256 = vmul.f32 %v928, %v1153
    %v1257 = vmul.f32 %v930, %v1155
    %v1258 = vmul.f32 %v932, %v1157
    %v1259 = vmul.f32 %v934, %v1159
    %v1260 = vmul.f32 %v936, %v1161
    %v1261 = vmul.f32 %v938, %v1163
    %v1262 = vmul.f32 %v940, %v1165
    %v1263 = vmul.f32 %v942, %v1167
    %v1264 = vmul.f32 %v944, %v1169
    %v1265 = vmul.f32 %v946, %v1171
    %v1266 = vmul.f32 %v948, %v1173
    %v1267 = vmul.f32 %v950, %v1175
    %v1268 = vmul.f32 %v952, %v1177
    %v1269 = vmul.f32 %v954, %v1179
    %v1270 = vmul.f32 %v956, %v1181
    %v1271 = vmul.f32 %v958, %v1183
    %v1272 = vmul.f32 %v960, %v1185
    %v1273 = vmul.f32 %v962, %v1187
    %v1274 = vmul.f32 %v964, %v1189
    %v1275 = vmul.f32 %v966, %v1191
    %v1276 = vmul.f32 %v968, %v1193
    %v1277 = vmul.f32 %v970, %v1195
    %v1278 = vmul.f32 %v972, %v1197
    %v1279 = vmul.f32 %v974, %v1199
    %v1280 = vmul.f32 %v976, %v1201
    %v1281 = vmul.f32 %v978, %v1203
    %v1282 = vmul.f32 %v980, %v1205
    %v1283 = vmul.f32 %v982, %v1207
    %v1284 = vmul.f32 %v984, %v1209
    %v1285 = vsel %vm159, %v1210, 0.0
    %1286 = vadd.xlane.f32.xlu0 %v1285
    %v1287 = vpop.xlane.xlu0 %1286
    %v1288 = vsel %vm159, %v1211, 0.0
    %1289 = vadd.xlane.f32.xlu0 %v1288
    %v1290 = vpop.xlane.xlu0 %1289
    %v1291 = vsel %vm159, %v1212, 0.0
    %1292 = vadd.xlane.f32.xlu0 %v1291
    %v1293 = vpop.xlane.xlu0 %1292
    %v1294 = vsel %vm159, %v1213, 0.0
    %1295 = vadd.xlane.f32.xlu0 %v1294
    %v1296 = vpop.xlane.xlu0 %1295
    %v1297 = vsel %vm159, %v1214, 0.0
    %1298 = vadd.xlane.f32.xlu0 %v1297
    %v1299 = vpop.xlane.xlu0 %1298
    %v1300 = vsel %vm159, %v1215, 0.0
    %1301 = vadd.xlane.f32.xlu0 %v1300
    %v1302 = vpop.xlane.xlu0 %1301
    %v1303 = vsel %vm159, %v1216, 0.0
    %1304 = vadd.xlane.f32.xlu0 %v1303
    %v1305 = vpop.xlane.xlu0 %1304
    %v1306 = vsel %vm159, %v1217, 0.0
    %1307 = vadd.xlane.f32.xlu0 %v1306
    %v1308 = vpop.xlane.xlu0 %1307
    %v1309 = vsel %vm159, %v1218, 0.0
    %1310 = vadd.xlane.f32.xlu0 %v1309
    %v1311 = vpop.xlane.xlu0 %1310
    %v1312 = vsel %vm159, %v1219, 0.0
    %1313 = vadd.xlane.f32.xlu0 %v1312
    %v1314 = vpop.xlane.xlu0 %1313
    %v1315 = vsel %vm159, %v1220, 0.0
    %1316 = vadd.xlane.f32.xlu0 %v1315
    %v1317 = vpop.xlane.xlu0 %1316
    %v1318 = vsel %vm159, %v1221, 0.0
    %1319 = vadd.xlane.f32.xlu0 %v1318
    %v1320 = vpop.xlane.xlu0 %1319
    %v1321 = vsel %vm159, %v1222, 0.0
    %1322 = vadd.xlane.f32.xlu0 %v1321
    %v1323 = vpop.xlane.xlu0 %1322
    %v1324 = vsel %vm159, %v1223, 0.0
    %1325 = vadd.xlane.f32.xlu0 %v1324
    %v1326 = vpop.xlane.xlu0 %1325
    %v1327 = vsel %vm159, %v1224, 0.0
    %1328 = vadd.xlane.f32.xlu0 %v1327
    %v1329 = vpop.xlane.xlu0 %1328
    %v1330 = vsel %vm159, %v1225, 0.0
    %1331 = vadd.xlane.f32.xlu0 %v1330
    %v1332 = vpop.xlane.xlu0 %1331
    %v1333 = vsel %vm159, %v1226, 0.0
    %1334 = vadd.xlane.f32.xlu0 %v1333
    %v1335 = vpop.xlane.xlu0 %1334
    %v1336 = vsel %vm159, %v1227, 0.0
    %1337 = vadd.xlane.f32.xlu0 %v1336
    %v1338 = vpop.xlane.xlu0 %1337
    %v1339 = vsel %vm159, %v1228, 0.0
    %1340 = vadd.xlane.f32.xlu0 %v1339
    %v1341 = vpop.xlane.xlu0 %1340
    %v1342 = vsel %vm159, %v1229, 0.0
    %1343 = vadd.xlane.f32.xlu0 %v1342
    %v1344 = vpop.xlane.xlu0 %1343
    %v1345 = vsel %vm159, %v1230, 0.0
    %1346 = vadd.xlane.f32.xlu0 %v1345
    %v1347 = vpop.xlane.xlu0 %1346
    %v1348 = vsel %vm159, %v1231, 0.0
    %1349 = vadd.xlane.f32.xlu0 %v1348
    %v1350 = vpop.xlane.xlu0 %1349
    %v1351 = vsel %vm159, %v1232, 0.0
    %1352 = vadd.xlane.f32.xlu0 %v1351
    %v1353 = vpop.xlane.xlu0 %1352
    %v1354 = vsel %vm159, %v1233, 0.0
    %1355 = vadd.xlane.f32.xlu0 %v1354
    %v1356 = vpop.xlane.xlu0 %1355
    %v1357 = vsel %vm159, %v1234, 0.0
    %1358 = vadd.xlane.f32.xlu0 %v1357
    %v1359 = vpop.xlane.xlu0 %1358
    %v1360 = vsel %vm159, %v1235, 0.0
    %1361 = vadd.xlane.f32.xlu0 %v1360
    %v1362 = vpop.xlane.xlu0 %1361
    %v1363 = vsel %vm159, %v1236, 0.0
    %1364 = vadd.xlane.f32.xlu0 %v1363
    %v1365 = vpop.xlane.xlu0 %1364
    %v1366 = vsel %vm159, %v1237, 0.0
    %1367 = vadd.xlane.f32.xlu0 %v1366
    %v1368 = vpop.xlane.xlu0 %1367
    %v1369 = vsel %vm159, %v1238, 0.0
    %1370 = vadd.xlane.f32.xlu0 %v1369
    %v1371 = vpop.xlane.xlu0 %1370
    %v1372 = vsel %vm159, %v1239, 0.0
    %1373 = vadd.xlane.f32.xlu0 %v1372
    %v1374 = vpop.xlane.xlu0 %1373
    %v1375 = vsel %vm159, %v1240, 0.0
    %1376 = vadd.xlane.f32.xlu0 %v1375
    %v1377 = vpop.xlane.xlu0 %1376
    %v1378 = vsel %vm159, %v1241, 0.0
    %1379 = vadd.xlane.f32.xlu0 %v1378
    %v1380 = vpop.xlane.xlu0 %1379
    %v1381 = vsel %vm159, %v1242, 0.0
    %1382 = vadd.xlane.f32.xlu0 %v1381
    %v1383 = vpop.xlane.xlu0 %1382
    %v1384 = vsel %vm159, %v1243, 0.0
    %1385 = vadd.xlane.f32.xlu0 %v1384
    %v1386 = vpop.xlane.xlu0 %1385
    %v1387 = vsel %vm159, %v1244, 0.0
    %1388 = vadd.xlane.f32.xlu0 %v1387
    %v1389 = vpop.xlane.xlu0 %1388
    %v1390 = vsel %vm159, %v1245, 0.0
    %1391 = vadd.xlane.f32.xlu0 %v1390
    %v1392 = vpop.xlane.xlu0 %1391
    %v1393 = vsel %vm159, %v1246, 0.0
    %1394 = vadd.xlane.f32.xlu0 %v1393
    %v1395 = vpop.xlane.xlu0 %1394
    %v1396 = vsel %vm159, %v1247, 0.0
    %1397 = vadd.xlane.f32.xlu0 %v1396
    %v1398 = vpop.xlane.xlu0 %1397
    %v1399 = vsel %vm159, %v1248, 0.0
    %1400 = vadd.xlane.f32.xlu0 %v1399
    %v1401 = vpop.xlane.xlu0 %1400
    %v1402 = vsel %vm159, %v1249, 0.0
    %1403 = vadd.xlane.f32.xlu0 %v1402
    %v1404 = vpop.xlane.xlu0 %1403
    %v1405 = vsel %vm159, %v1250, 0.0
    %1406 = vadd.xlane.f32.xlu0 %v1405
    %v1407 = vpop.xlane.xlu0 %1406
    %v1408 = vsel %vm159, %v1251, 0.0
    %1409 = vadd.xlane.f32.xlu0 %v1408
    %v1410 = vpop.xlane.xlu0 %1409
    %v1411 = vsel %vm159, %v1252, 0.0
    %1412 = vadd.xlane.f32.xlu0 %v1411
    %v1413 = vpop.xlane.xlu0 %1412
    %v1414 = vsel %vm159, %v1253, 0.0
    %1415 = vadd.xlane.f32.xlu0 %v1414
    %v1416 = vpop.xlane.xlu0 %1415
    %v1417 = vsel %vm159, %v1254, 0.0
    %1418 = vadd.xlane.f32.xlu0 %v1417
    %v1419 = vpop.xlane.xlu0 %1418
    %v1420 = vsel %vm159, %v1255, 0.0
    %1421 = vadd.xlane.f32.xlu0 %v1420
    %v1422 = vpop.xlane.xlu0 %1421
    %v1423 = vsel %vm159, %v1256, 0.0
    %1424 = vadd.xlane.f32.xlu0 %v1423
    %v1425 = vpop.xlane.xlu0 %1424
    %v1426 = vsel %vm159, %v1257, 0.0
    %1427 = vadd.xlane.f32.xlu0 %v1426
    %v1428 = vpop.xlane.xlu0 %1427
    %v1429 = vsel %vm159, %v1258, 0.0
    %1430 = vadd.xlane.f32.xlu0 %v1429
    %v1431 = vpop.xlane.xlu0 %1430
    %v1432 = vsel %vm159, %v1259, 0.0
    %1433 = vadd.xlane.f32.xlu0 %v1432
    %v1434 = vpop.xlane.xlu0 %1433
    %v1435 = vsel %vm159, %v1260, 0.0
    %1436 = vadd.xlane.f32.xlu0 %v1435
    %v1437 = vpop.xlane.xlu0 %1436
    %v1438 = vsel %vm159, %v1261, 0.0
    %1439 = vadd.xlane.f32.xlu0 %v1438
    %v1440 = vpop.xlane.xlu0 %1439
    %v1441 = vsel %vm159, %v1262, 0.0
    %1442 = vadd.xlane.f32.xlu0 %v1441
    %v1443 = vpop.xlane.xlu0 %1442
    %v1444 = vsel %vm159, %v1263, 0.0
    %1445 = vadd.xlane.f32.xlu0 %v1444
    %v1446 = vpop.xlane.xlu0 %1445
    %v1447 = vsel %vm159, %v1264, 0.0
    %1448 = vadd.xlane.f32.xlu0 %v1447
    %v1449 = vpop.xlane.xlu0 %1448
    %v1450 = vsel %vm159, %v1265, 0.0
    %1451 = vadd.xlane.f32.xlu0 %v1450
    %v1452 = vpop.xlane.xlu0 %1451
    %v1453 = vsel %vm159, %v1266, 0.0
    %1454 = vadd.xlane.f32.xlu0 %v1453
    %v1455 = vpop.xlane.xlu0 %1454
    %v1456 = vsel %vm159, %v1267, 0.0
    %1457 = vadd.xlane.f32.xlu0 %v1456
    %v1458 = vpop.xlane.xlu0 %1457
    %v1459 = vsel %vm159, %v1268, 0.0
    %1460 = vadd.xlane.f32.xlu0 %v1459
    %v1461 = vpop.xlane.xlu0 %1460
    %v1462 = vsel %vm159, %v1269, 0.0
    %1463 = vadd.xlane.f32.xlu0 %v1462
    %v1464 = vpop.xlane.xlu0 %1463
    %v1465 = vsel %vm159, %v1270, 0.0
    %1466 = vadd.xlane.f32.xlu0 %v1465
    %v1467 = vpop.xlane.xlu0 %1466
    %v1468 = vsel %vm159, %v1271, 0.0
    %1469 = vadd.xlane.f32.xlu0 %v1468
    %v1470 = vpop.xlane.xlu0 %1469
    %v1471 = vsel %vm159, %v1272, 0.0
    %1472 = vadd.xlane.f32.xlu0 %v1471
    %v1473 = vpop.xlane.xlu0 %1472
    %v1474 = vsel %vm159, %v1273, 0.0
    %1475 = vadd.xlane.f32.xlu0 %v1474
    %v1476 = vpop.xlane.xlu0 %1475
    %v1477 = vsel %vm159, %v1274, 0.0
    %1478 = vadd.xlane.f32.xlu0 %v1477
    %v1479 = vpop.xlane.xlu0 %1478
    %v1480 = vsel %vm159, %v1275, 0.0
    %1481 = vadd.xlane.f32.xlu0 %v1480
    %v1482 = vpop.xlane.xlu0 %1481
    %v1483 = vsel %vm159, %v1276, 0.0
    %1484 = vadd.xlane.f32.xlu0 %v1483
    %v1485 = vpop.xlane.xlu0 %1484
    %v1486 = vsel %vm159, %v1277, 0.0
    %1487 = vadd.xlane.f32.xlu0 %v1486
    %v1488 = vpop.xlane.xlu0 %1487
    %v1489 = vsel %vm159, %v1278, 0.0
    %1490 = vadd.xlane.f32.xlu0 %v1489
    %v1491 = vpop.xlane.xlu0 %1490
    %v1492 = vsel %vm159, %v1279, 0.0
    %1493 = vadd.xlane.f32.xlu0 %v1492
    %v1494 = vpop.xlane.xlu0 %1493
    %v1495 = vsel %vm159, %v1280, 0.0
    %1496 = vadd.xlane.f32.xlu0 %v1495
    %v1497 = vpop.xlane.xlu0 %1496
    %v1498 = vsel %vm159, %v1281, 0.0
    %1499 = vadd.xlane.f32.xlu0 %v1498
    %v1500 = vpop.xlane.xlu0 %1499
    %v1501 = vsel %vm159, %v1282, 0.0
    %1502 = vadd.xlane.f32.xlu0 %v1501
    %v1503 = vpop.xlane.xlu0 %1502
    %v1504 = vsel %vm159, %v1283, 0.0
    %1505 = vadd.xlane.f32.xlu0 %v1504
    %v1506 = vpop.xlane.xlu0 %1505
    %v1507 = vsel %vm159, %v1284, 0.0
    %1508 = vadd.xlane.f32.xlu0 %v1507
    %v1509 = vpop.xlane.xlu0 %1508
    %v1510 = vsub.f32 0.0, %v1287
    %v1511 = vsub.f32 0.0, %v1290
    %v1512 = vsub.f32 0.0, %v1293
    %v1513 = vsub.f32 0.0, %v1296
    %v1514 = vsub.f32 0.0, %v1299
    %v1515 = vsub.f32 0.0, %v1302
    %v1516 = vsub.f32 0.0, %v1305
    %v1517 = vsub.f32 0.0, %v1308
    %v1518 = vsub.f32 0.0, %v1311
    %v1519 = vsub.f32 0.0, %v1314
    %v1520 = vsub.f32 0.0, %v1317
    %v1521 = vsub.f32 0.0, %v1320
    %v1522 = vsub.f32 0.0, %v1323
    %v1523 = vsub.f32 0.0, %v1326
    %v1524 = vsub.f32 0.0, %v1329
    %v1525 = vsub.f32 0.0, %v1332
    %v1526 = vsub.f32 0.0, %v1335
    %v1527 = vsub.f32 0.0, %v1338
    %v1528 = vsub.f32 0.0, %v1341
    %v1529 = vsub.f32 0.0, %v1344
    %v1530 = vsub.f32 0.0, %v1347
    %v1531 = vsub.f32 0.0, %v1350
    %v1532 = vsub.f32 0.0, %v1353
    %v1533 = vsub.f32 0.0, %v1356
    %v1534 = vsub.f32 0.0, %v1359
    %v1535 = vsub.f32 0.0, %v1362
    %v1536 = vsub.f32 0.0, %v1365
    %v1537 = vsub.f32 0.0, %v1368
    %v1538 = vsub.f32 0.0, %v1371
    %v1539 = vsub.f32 0.0, %v1374
    %v1540 = vsub.f32 0.0, %v1377
    %v1541 = vsub.f32 0.0, %v1380
    %v1542 = vsub.f32 0.0, %v1383
    %v1543 = vsub.f32 0.0, %v1386
    %v1544 = vsub.f32 0.0, %v1389
    %v1545 = vsub.f32 0.0, %v1392
    %v1546 = vsub.f32 0.0, %v1395
    %v1547 = vsub.f32 0.0, %v1398
    %v1548 = vsub.f32 0.0, %v1401
    %v1549 = vsub.f32 0.0, %v1404
    %v1550 = vsub.f32 0.0, %v1407
    %v1551 = vsub.f32 0.0, %v1410
    %v1552 = vsub.f32 0.0, %v1413
    %v1553 = vsub.f32 0.0, %v1416
    %v1554 = vsub.f32 0.0, %v1419
    %v1555 = vsub.f32 0.0, %v1422
    %v1556 = vsub.f32 0.0, %v1425
    %v1557 = vsub.f32 0.0, %v1428
    %v1558 = vsub.f32 0.0, %v1431
    %v1559 = vsub.f32 0.0, %v1434
    %v1560 = vsub.f32 0.0, %v1437
    %v1561 = vsub.f32 0.0, %v1440
    %v1562 = vsub.f32 0.0, %v1443
    %v1563 = vsub.f32 0.0, %v1446
    %v1564 = vsub.f32 0.0, %v1449
    %v1565 = vsub.f32 0.0, %v1452
    %v1566 = vsub.f32 0.0, %v1455
    %v1567 = vsub.f32 0.0, %v1458
    %v1568 = vsub.f32 0.0, %v1461
    %v1569 = vsub.f32 0.0, %v1464
    %v1570 = vsub.f32 0.0, %v1467
    %v1571 = vsub.f32 0.0, %v1470
    %v1572 = vsub.f32 0.0, %v1473
    %v1573 = vsub.f32 0.0, %v1476
    %v1574 = vsub.f32 0.0, %v1479
    %v1575 = vsub.f32 0.0, %v1482
    %v1576 = vsub.f32 0.0, %v1485
    %v1577 = vsub.f32 0.0, %v1488
    %v1578 = vsub.f32 0.0, %v1491
    %v1579 = vsub.f32 0.0, %v1494
    %v1580 = vsub.f32 0.0, %v1497
    %v1581 = vsub.f32 0.0, %v1500
    %v1582 = vsub.f32 0.0, %v1503
    %v1583 = vsub.f32 0.0, %v1506
    %v1584 = vsub.f32 0.0, %v1509
    %v1585 = vsub.f32 0.0, %v1510
    %v1586 = vsub.f32 0.0, %v1511
    %v1587 = vsub.f32 0.0, %v1512
    %v1588 = vsub.f32 0.0, %v1513
    %v1589 = vsub.f32 0.0, %v1514
    %v1590 = vsub.f32 0.0, %v1515
    %v1591 = vsub.f32 0.0, %v1516
    %v1592 = vsub.f32 0.0, %v1517
    %v1593 = vsub.f32 0.0, %v1518
    %v1594 = vsub.f32 0.0, %v1519
    %v1595 = vsub.f32 0.0, %v1520
    %v1596 = vsub.f32 0.0, %v1521
    %v1597 = vsub.f32 0.0, %v1522
    %v1598 = vsub.f32 0.0, %v1523
    %v1599 = vsub.f32 0.0, %v1524
    %v1600 = vsub.f32 0.0, %v1525
    %v1601 = vsub.f32 0.0, %v1526
    %v1602 = vsub.f32 0.0, %v1527
    %v1603 = vsub.f32 0.0, %v1528
    %v1604 = vsub.f32 0.0, %v1529
    %v1605 = vsub.f32 0.0, %v1530
    %v1606 = vsub.f32 0.0, %v1531
    %v1607 = vsub.f32 0.0, %v1532
    %v1608 = vsub.f32 0.0, %v1533
    %v1609 = vsub.f32 0.0, %v1534
    %v1610 = vsub.f32 0.0, %v1535
    %v1611 = vsub.f32 0.0, %v1536
    %v1612 = vsub.f32 0.0, %v1537
    %v1613 = vsub.f32 0.0, %v1538
    %v1614 = vsub.f32 0.0, %v1539
    %v1615 = vsub.f32 0.0, %v1540
    %v1616 = vsub.f32 0.0, %v1541
    %v1617 = vsub.f32 0.0, %v1542
    %v1618 = vsub.f32 0.0, %v1543
    %v1619 = vsub.f32 0.0, %v1544
    %v1620 = vsub.f32 0.0, %v1545
    %v1621 = vsub.f32 0.0, %v1546
    %v1622 = vsub.f32 0.0, %v1547
    %v1623 = vsub.f32 0.0, %v1548
    %v1624 = vsub.f32 0.0, %v1549
    %v1625 = vsub.f32 0.0, %v1550
    %v1626 = vsub.f32 0.0, %v1551
    %v1627 = vsub.f32 0.0, %v1552
    %v1628 = vsub.f32 0.0, %v1553
    %v1629 = vsub.f32 0.0, %v1554
    %v1630 = vsub.f32 0.0, %v1555
    %v1631 = vsub.f32 0.0, %v1556
    %v1632 = vsub.f32 0.0, %v1557
    %v1633 = vsub.f32 0.0, %v1558
    %v1634 = vsub.f32 0.0, %v1559
    %v1635 = vsub.f32 0.0, %v1560
    %v1636 = vsub.f32 0.0, %v1561
    %v1637 = vsub.f32 0.0, %v1562
    %v1638 = vsub.f32 0.0, %v1563
    %v1639 = vsub.f32 0.0, %v1564
    %v1640 = vsub.f32 0.0, %v1565
    %v1641 = vsub.f32 0.0, %v1566
    %v1642 = vsub.f32 0.0, %v1567
    %v1643 = vsub.f32 0.0, %v1568
    %v1644 = vsub.f32 0.0, %v1569
    %v1645 = vsub.f32 0.0, %v1570
    %v1646 = vsub.f32 0.0, %v1571
    %v1647 = vsub.f32 0.0, %v1572
    %v1648 = vsub.f32 0.0, %v1573
    %v1649 = vsub.f32 0.0, %v1574
    %v1650 = vsub.f32 0.0, %v1575
    %v1651 = vsub.f32 0.0, %v1576
    %v1652 = vsub.f32 0.0, %v1577
    %v1653 = vsub.f32 0.0, %v1578
    %v1654 = vsub.f32 0.0, %v1579
    %v1655 = vsub.f32 0.0, %v1580
    %v1656 = vsub.f32 0.0, %v1581
    %v1657 = vsub.f32 0.0, %v1582
    %v1658 = vsub.f32 0.0, %v1583
    %v1659 = vsub.f32 0.0, %v1584
    %v1660 = vmul.f32 %v1585, 1.442695
    %v1661 = vpow.pop %v1660
    %v1662 = vmul.f32 %v1586, 1.442695
    %v1663 = vpow.pop %v1662
    %v1664 = vmul.f32 %v1587, 1.442695
    %v1665 = vpow.pop %v1664
    %v1666 = vmul.f32 %v1588, 1.442695
    %v1667 = vpow.pop %v1666
    %v1668 = vmul.f32 %v1589, 1.442695
    %v1669 = vpow.pop %v1668
    %v1670 = vmul.f32 %v1590, 1.442695
    %v1671 = vpow.pop %v1670
    %v1672 = vmul.f32 %v1591, 1.442695
    %v1673 = vpow.pop %v1672
    %v1674 = vmul.f32 %v1592, 1.442695
    %v1675 = vpow.pop %v1674
    %v1676 = vmul.f32 %v1593, 1.442695
    %v1677 = vpow.pop %v1676
    %v1678 = vmul.f32 %v1594, 1.442695
    %v1679 = vpow.pop %v1678
    %v1680 = vmul.f32 %v1595, 1.442695
    %v1681 = vpow.pop %v1680
    %v1682 = vmul.f32 %v1596, 1.442695
    %v1683 = vpow.pop %v1682
    %v1684 = vmul.f32 %v1597, 1.442695
    %v1685 = vpow.pop %v1684
    %v1686 = vmul.f32 %v1598, 1.442695
    %v1687 = vpow.pop %v1686
    %v1688 = vmul.f32 %v1599, 1.442695
    %v1689 = vpow.pop %v1688
    %v1690 = vmul.f32 %v1600, 1.442695
    %v1691 = vpow.pop %v1690
    %v1692 = vmul.f32 %v1601, 1.442695
    %v1693 = vpow.pop %v1692
    %v1694 = vmul.f32 %v1602, 1.442695
    %v1695 = vpow.pop %v1694
    %v1696 = vmul.f32 %v1603, 1.442695
    %v1697 = vpow.pop %v1696
    %v1698 = vmul.f32 %v1604, 1.442695
    %v1699 = vpow.pop %v1698
    %v1700 = vmul.f32 %v1605, 1.442695
    %v1701 = vpow.pop %v1700
    %v1702 = vmul.f32 %v1606, 1.442695
    %v1703 = vpow.pop %v1702
    %v1704 = vmul.f32 %v1607, 1.442695
    %v1705 = vpow.pop %v1704
    %v1706 = vmul.f32 %v1608, 1.442695
    %v1707 = vpow.pop %v1706
    %v1708 = vmul.f32 %v1609, 1.442695
    %v1709 = vpow.pop %v1708
    %v1710 = vmul.f32 %v1610, 1.442695
    %v1711 = vpow.pop %v1710
    %v1712 = vmul.f32 %v1611, 1.442695
    %v1713 = vpow.pop %v1712
    %v1714 = vmul.f32 %v1612, 1.442695
    %v1715 = vpow.pop %v1714
    %v1716 = vmul.f32 %v1613, 1.442695
    %v1717 = vpow.pop %v1716
    %v1718 = vmul.f32 %v1614, 1.442695
    %v1719 = vpow.pop %v1718
    %v1720 = vmul.f32 %v1615, 1.442695
    %v1721 = vpow.pop %v1720
    %v1722 = vmul.f32 %v1616, 1.442695
    %v1723 = vpow.pop %v1722
    %v1724 = vmul.f32 %v1617, 1.442695
    %v1725 = vpow.pop %v1724
    %v1726 = vmul.f32 %v1618, 1.442695
    %v1727 = vpow.pop %v1726
    %v1728 = vmul.f32 %v1619, 1.442695
    %v1729 = vpow.pop %v1728
    %v1730 = vmul.f32 %v1620, 1.442695
    %v1731 = vpow.pop %v1730
    %v1732 = vmul.f32 %v1621, 1.442695
    %v1733 = vpow.pop %v1732
    %v1734 = vmul.f32 %v1622, 1.442695
    %v1735 = vpow.pop %v1734
    %v1736 = vmul.f32 %v1623, 1.442695
    %v1737 = vpow.pop %v1736
    %v1738 = vmul.f32 %v1624, 1.442695
    %v1739 = vpow.pop %v1738
    %v1740 = vmul.f32 %v1625, 1.442695
    %v1741 = vpow.pop %v1740
    %v1742 = vmul.f32 %v1626, 1.442695
    %v1743 = vpow.pop %v1742
    %v1744 = vmul.f32 %v1627, 1.442695
    %v1745 = vpow.pop %v1744
    %v1746 = vmul.f32 %v1628, 1.442695
    %v1747 = vpow.pop %v1746
    %v1748 = vmul.f32 %v1629, 1.442695
    %v1749 = vpow.pop %v1748
    %v1750 = vmul.f32 %v1630, 1.442695
    %v1751 = vpow.pop %v1750
    %v1752 = vmul.f32 %v1631, 1.442695
    %v1753 = vpow.pop %v1752
    %v1754 = vmul.f32 %v1632, 1.442695
    %v1755 = vpow.pop %v1754
    %v1756 = vmul.f32 %v1633, 1.442695
    %v1757 = vpow.pop %v1756
    %v1758 = vmul.f32 %v1634, 1.442695
    %v1759 = vpow.pop %v1758
    %v1760 = vmul.f32 %v1635, 1.442695
    %v1761 = vpow.pop %v1760
    %v1762 = vmul.f32 %v1636, 1.442695
    %v1763 = vpow.pop %v1762
    %v1764 = vmul.f32 %v1637, 1.442695
    %v1765 = vpow.pop %v1764
    %v1766 = vmul.f32 %v1638, 1.442695
    %v1767 = vpow.pop %v1766
    %v1768 = vmul.f32 %v1639, 1.442695
    %v1769 = vpow.pop %v1768
    %v1770 = vmul.f32 %v1640, 1.442695
    %v1771 = vpow.pop %v1770
    %v1772 = vmul.f32 %v1641, 1.442695
    %v1773 = vpow.pop %v1772
    %v1774 = vmul.f32 %v1642, 1.442695
    %v1775 = vpow.pop %v1774
    %v1776 = vmul.f32 %v1643, 1.442695
    %v1777 = vpow.pop %v1776
    %v1778 = vmul.f32 %v1644, 1.442695
    %v1779 = vpow.pop %v1778
    %v1780 = vmul.f32 %v1645, 1.442695
    %v1781 = vpow.pop %v1780
    %v1782 = vmul.f32 %v1646, 1.442695
    %v1783 = vpow.pop %v1782
    %v1784 = vmul.f32 %v1647, 1.442695
    %v1785 = vpow.pop %v1784
    %v1786 = vmul.f32 %v1648, 1.442695
    %v1787 = vpow.pop %v1786
    %v1788 = vmul.f32 %v1649, 1.442695
    %v1789 = vpow.pop %v1788
    %v1790 = vmul.f32 %v1650, 1.442695
    %v1791 = vpow.pop %v1790
    %v1792 = vmul.f32 %v1651, 1.442695
    %v1793 = vpow.pop %v1792
    %v1794 = vmul.f32 %v1652, 1.442695
    %v1795 = vpow.pop %v1794
    %v1796 = vmul.f32 %v1653, 1.442695
    %v1797 = vpow.pop %v1796
    %v1798 = vmul.f32 %v1654, 1.442695
    %v1799 = vpow.pop %v1798
    %v1800 = vmul.f32 %v1655, 1.442695
    %v1801 = vpow.pop %v1800
    %v1802 = vmul.f32 %v1656, 1.442695
    %v1803 = vpow.pop %v1802
    %v1804 = vmul.f32 %v1657, 1.442695
    %v1805 = vpow.pop %v1804
    %v1806 = vmul.f32 %v1658, 1.442695
    %v1807 = vpow.pop %v1806
    %v1808 = vmul.f32 %v1659, 1.442695
    %v1809 = vpow.pop %v1808
    %v1810 = vadd.f32 %v1661, 1.0
    %v1811 = vadd.f32 %v1663, 1.0
    %v1812 = vadd.f32 %v1665, 1.0
    %v1813 = vadd.f32 %v1667, 1.0
    %v1814 = vadd.f32 %v1669, 1.0
    %v1815 = vadd.f32 %v1671, 1.0
    %v1816 = vadd.f32 %v1673, 1.0
    %v1817 = vadd.f32 %v1675, 1.0
    %v1818 = vadd.f32 %v1677, 1.0
    %v1819 = vadd.f32 %v1679, 1.0
    %v1820 = vadd.f32 %v1681, 1.0
    %v1821 = vadd.f32 %v1683, 1.0
    %v1822 = vadd.f32 %v1685, 1.0
    %v1823 = vadd.f32 %v1687, 1.0
    %v1824 = vadd.f32 %v1689, 1.0
    %v1825 = vadd.f32 %v1691, 1.0
    %v1826 = vadd.f32 %v1693, 1.0
    %v1827 = vadd.f32 %v1695, 1.0
    %v1828 = vadd.f32 %v1697, 1.0
    %v1829 = vadd.f32 %v1699, 1.0
    %v1830 = vadd.f32 %v1701, 1.0
    %v1831 = vadd.f32 %v1703, 1.0
    %v1832 = vadd.f32 %v1705, 1.0
    %v1833 = vadd.f32 %v1707, 1.0
    %v1834 = vadd.f32 %v1709, 1.0
    %v1835 = vadd.f32 %v1711, 1.0
    %v1836 = vadd.f32 %v1713, 1.0
    %v1837 = vadd.f32 %v1715, 1.0
    %v1838 = vadd.f32 %v1717, 1.0
    %v1839 = vadd.f32 %v1719, 1.0
    %v1840 = vadd.f32 %v1721, 1.0
    %v1841 = vadd.f32 %v1723, 1.0
    %v1842 = vadd.f32 %v1725, 1.0
    %v1843 = vadd.f32 %v1727, 1.0
    %v1844 = vadd.f32 %v1729, 1.0
    %v1845 = vadd.f32 %v1731, 1.0
    %v1846 = vadd.f32 %v1733, 1.0
    %v1847 = vadd.f32 %v1735, 1.0
    %v1848 = vadd.f32 %v1737, 1.0
    %v1849 = vadd.f32 %v1739, 1.0
    %v1850 = vadd.f32 %v1741, 1.0
    %v1851 = vadd.f32 %v1743, 1.0
    %v1852 = vadd.f32 %v1745, 1.0
    %v1853 = vadd.f32 %v1747, 1.0
    %v1854 = vadd.f32 %v1749, 1.0
    %v1855 = vadd.f32 %v1751, 1.0
    %v1856 = vadd.f32 %v1753, 1.0
    %v1857 = vadd.f32 %v1755, 1.0
    %v1858 = vadd.f32 %v1757, 1.0
    %v1859 = vadd.f32 %v1759, 1.0
    %v1860 = vadd.f32 %v1761, 1.0
    %v1861 = vadd.f32 %v1763, 1.0
    %v1862 = vadd.f32 %v1765, 1.0
    %v1863 = vadd.f32 %v1767, 1.0
    %v1864 = vadd.f32 %v1769, 1.0
    %v1865 = vadd.f32 %v1771, 1.0
    %v1866 = vadd.f32 %v1773, 1.0
    %v1867 = vadd.f32 %v1775, 1.0
    %v1868 = vadd.f32 %v1777, 1.0
    %v1869 = vadd.f32 %v1779, 1.0
    %v1870 = vadd.f32 %v1781, 1.0
    %v1871 = vadd.f32 %v1783, 1.0
    %v1872 = vadd.f32 %v1785, 1.0
    %v1873 = vadd.f32 %v1787, 1.0
    %v1874 = vadd.f32 %v1789, 1.0
    %v1875 = vadd.f32 %v1791, 1.0
    %v1876 = vadd.f32 %v1793, 1.0
    %v1877 = vadd.f32 %v1795, 1.0
    %v1878 = vadd.f32 %v1797, 1.0
    %v1879 = vadd.f32 %v1799, 1.0
    %v1880 = vadd.f32 %v1801, 1.0
    %v1881 = vadd.f32 %v1803, 1.0
    %v1882 = vadd.f32 %v1805, 1.0
    %v1883 = vadd.f32 %v1807, 1.0
    %v1884 = vadd.f32 %v1809, 1.0
    %v1885 = vmul.f32 %v836, %v1810
    %v1886 = vmul.f32 %v838, %v1811
    %v1887 = vmul.f32 %v840, %v1812
    %v1888 = vmul.f32 %v842, %v1813
    %v1889 = vmul.f32 %v844, %v1814
    %v1890 = vmul.f32 %v846, %v1815
    %v1891 = vmul.f32 %v848, %v1816
    %v1892 = vmul.f32 %v850, %v1817
    %v1893 = vmul.f32 %v852, %v1818
    %v1894 = vmul.f32 %v854, %v1819
    %v1895 = vmul.f32 %v856, %v1820
    %v1896 = vmul.f32 %v858, %v1821
    %v1897 = vmul.f32 %v860, %v1822
    %v1898 = vmul.f32 %v862, %v1823
    %v1899 = vmul.f32 %v864, %v1824
    %v1900 = vmul.f32 %v866, %v1825
    %v1901 = vmul.f32 %v868, %v1826
    %v1902 = vmul.f32 %v870, %v1827
    %v1903 = vmul.f32 %v872, %v1828
    %v1904 = vmul.f32 %v874, %v1829
    %v1905 = vmul.f32 %v876, %v1830
    %v1906 = vmul.f32 %v878, %v1831
    %v1907 = vmul.f32 %v880, %v1832
    %v1908 = vmul.f32 %v882, %v1833
    %v1909 = vmul.f32 %v884, %v1834
    %v1910 = vmul.f32 %v886, %v1835
    %v1911 = vmul.f32 %v888, %v1836
    %v1912 = vmul.f32 %v890, %v1837
    %v1913 = vmul.f32 %v892, %v1838
    %v1914 = vmul.f32 %v894, %v1839
    %v1915 = vmul.f32 %v896, %v1840
    %v1916 = vmul.f32 %v898, %v1841
    %v1917 = vmul.f32 %v900, %v1842
    %v1918 = vmul.f32 %v902, %v1843
    %v1919 = vmul.f32 %v904, %v1844
    %v1920 = vmul.f32 %v906, %v1845
    %v1921 = vmul.f32 %v908, %v1846
    %v1922 = vmul.f32 %v910, %v1847
    %v1923 = vmul.f32 %v912, %v1848
    %v1924 = vmul.f32 %v914, %v1849
    %v1925 = vmul.f32 %v916, %v1850
    %v1926 = vmul.f32 %v918, %v1851
    %v1927 = vmul.f32 %v920, %v1852
    %v1928 = vmul.f32 %v922, %v1853
    %v1929 = vmul.f32 %v924, %v1854
    %v1930 = vmul.f32 %v926, %v1855
    %v1931 = vmul.f32 %v928, %v1856
    %v1932 = vmul.f32 %v930, %v1857
    %v1933 = vmul.f32 %v932, %v1858
    %v1934 = vmul.f32 %v934, %v1859
    %v1935 = vmul.f32 %v936, %v1860
    %v1936 = vmul.f32 %v938, %v1861
    %v1937 = vmul.f32 %v940, %v1862
    %v1938 = vmul.f32 %v942, %v1863
    %v1939 = vmul.f32 %v944, %v1864
    %v1940 = vmul.f32 %v946, %v1865
    %v1941 = vmul.f32 %v948, %v1866
    %v1942 = vmul.f32 %v950, %v1867
    %v1943 = vmul.f32 %v952, %v1868
    %v1944 = vmul.f32 %v954, %v1869
    %v1945 = vmul.f32 %v956, %v1870
    %v1946 = vmul.f32 %v958, %v1871
    %v1947 = vmul.f32 %v960, %v1872
    %v1948 = vmul.f32 %v962, %v1873
    %v1949 = vmul.f32 %v964, %v1874
    %v1950 = vmul.f32 %v966, %v1875
    %v1951 = vmul.f32 %v968, %v1876
    %v1952 = vmul.f32 %v970, %v1877
    %v1953 = vmul.f32 %v972, %v1878
    %v1954 = vmul.f32 %v974, %v1879
    %v1955 = vmul.f32 %v976, %v1880
    %v1956 = vmul.f32 %v978, %v1881
    %v1957 = vmul.f32 %v980, %v1882
    %v1958 = vmul.f32 %v982, %v1883
    %v1959 = vmul.f32 %v984, %v1884
    %1960 = vxpose.xlu0.b32.start [1/16] %v1885, 128
    %1961 = vxpose.xlu0.b32.cont [2/16] %v1886, 128
    %1962 = vxpose.xlu0.b32.cont [3/16] %v1887, 128
    %1963 = vxpose.xlu0.b32.cont [4/16] %v1888, 128
    %1964 = vxpose.xlu0.b32.cont [5/16] %v1889, 128
    %1965 = vxpose.xlu0.b32.cont [6/16] %v1890, 128
    %1966 = vxpose.xlu0.b32.cont [7/16] %v1891, 128
    %1967 = vxpose.xlu0.b32.cont [8/16] %v1892, 128
    %1968 = vxpose.xlu0.b32.cont [9/16] %v1893, 128
    %1969 = vxpose.xlu0.b32.cont [10/16] %v1894, 128
    %1970 = vxpose.xlu0.b32.cont [11/16] %v1895, 128
    %1971 = vxpose.xlu0.b32.cont [12/16] %v1896, 128
    %1972 = vxpose.xlu0.b32.cont [13/16] %v1897, 128
    %1973 = vxpose.xlu0.b32.cont [14/16] %v1898, 128
    %1974 = vxpose.xlu0.b32.cont [15/16] %v1899, 128
    %1975 = vxpose.xlu0.b32.end [16/16] %v1900, 128
    %v1976 = vpop.trf.xlu0
    %v1977 = vpop.trf.xlu0
    %v1978 = vpop.trf.xlu0
    %v1979 = vpop.trf.xlu0
    %v1980 = vpop.trf.xlu0
    %v1981 = vpop.trf.xlu0
    %v1982 = vpop.trf.xlu0
    %v1983 = vpop.trf.xlu0
    %v1984 = vpop.trf.xlu0
    %v1985 = vpop.trf.xlu0
    %v1986 = vpop.trf.xlu0
    %v1987 = vpop.trf.xlu0
    %v1988 = vpop.trf.xlu0
    %v1989 = vpop.trf.xlu0
    %v1990 = vpop.trf.xlu0
    %v1991 = vpop.trf.xlu0
    %1992 = vxpose.xlu0.b32.start [1/16] %v1901, 128
    %1993 = vxpose.xlu0.b32.cont [2/16] %v1902, 128
    %1994 = vxpose.xlu0.b32.cont [3/16] %v1903, 128
    %1995 = vxpose.xlu0.b32.cont [4/16] %v1904, 128
    %1996 = vxpose.xlu0.b32.cont [5/16] %v1905, 128
    %1997 = vxpose.xlu0.b32.cont [6/16] %v1906, 128
    %1998 = vxpose.xlu0.b32.cont [7/16] %v1907, 128
    %1999 = vxpose.xlu0.b32.cont [8/16] %v1908, 128
    %2000 = vxpose.xlu0.b32.cont [9/16] %v1909, 128
    %2001 = vxpose.xlu0.b32.cont [10/16] %v1910, 128
    %2002 = vxpose.xlu0.b32.cont [11/16] %v1911, 128
    %2003 = vxpose.xlu0.b32.cont [12/16] %v1912, 128
    %2004 = vxpose.xlu0.b32.cont [13/16] %v1913, 128
    %2005 = vxpose.xlu0.b32.cont [14/16] %v1914, 128
    %2006 = vxpose.xlu0.b32.cont [15/16] %v1915, 128
    %2007 = vxpose.xlu0.b32.end [16/16] %v1916, 128
    %v2008 = vpop.trf.xlu0
    %v2009 = vpop.trf.xlu0
    %v2010 = vpop.trf.xlu0
    %v2011 = vpop.trf.xlu0
    %v2012 = vpop.trf.xlu0
    %v2013 = vpop.trf.xlu0
    %v2014 = vpop.trf.xlu0
    %v2015 = vpop.trf.xlu0
    %v2016 = vpop.trf.xlu0
    %v2017 = vpop.trf.xlu0
    %v2018 = vpop.trf.xlu0
    %v2019 = vpop.trf.xlu0
    %v2020 = vpop.trf.xlu0
    %v2021 = vpop.trf.xlu0
    %v2022 = vpop.trf.xlu0
    %v2023 = vpop.trf.xlu0
    %2024 = vxpose.xlu0.b32.start [1/16] %v1917, 128
    %2025 = vxpose.xlu0.b32.cont [2/16] %v1918, 128
    %2026 = vxpose.xlu0.b32.cont [3/16] %v1919, 128
    %2027 = vxpose.xlu0.b32.cont [4/16] %v1920, 128
    %2028 = vxpose.xlu0.b32.cont [5/16] %v1921, 128
    %2029 = vxpose.xlu0.b32.cont [6/16] %v1922, 128
    %2030 = vxpose.xlu0.b32.cont [7/16] %v1923, 128
    %2031 = vxpose.xlu0.b32.cont [8/16] %v1924, 128
    %2032 = vxpose.xlu0.b32.cont [9/16] %v1925, 128
    %2033 = vxpose.xlu0.b32.cont [10/16] %v1926, 128
    %2034 = vxpose.xlu0.b32.cont [11/16] %v1927, 128
    %2035 = vxpose.xlu0.b32.cont [12/16] %v1928, 128
    %2036 = vxpose.xlu0.b32.cont [13/16] %v1929, 128
    %2037 = vxpose.xlu0.b32.cont [14/16] %v1930, 128
    %2038 = vxpose.xlu0.b32.cont [15/16] %v1931, 128
    %2039 = vxpose.xlu0.b32.end [16/16] %v1932, 128
    %v2040 = vpop.trf.xlu0
    %v2041 = vpop.trf.xlu0
    %v2042 = vpop.trf.xlu0
    %v2043 = vpop.trf.xlu0
    %v2044 = vpop.trf.xlu0
    %v2045 = vpop.trf.xlu0
    %v2046 = vpop.trf.xlu0
    %v2047 = vpop.trf.xlu0
    %v2048 = vpop.trf.xlu0
    %v2049 = vpop.trf.xlu0
    %v2050 = vpop.trf.xlu0
    %v2051 = vpop.trf.xlu0
    %v2052 = vpop.trf.xlu0
    %v2053 = vpop.trf.xlu0
    %v2054 = vpop.trf.xlu0
    %v2055 = vpop.trf.xlu0
    %2056 = vxpose.xlu0.b32.start [1/16] %v1933, 128
    %2057 = vxpose.xlu0.b32.cont [2/16] %v1934, 128
    %2058 = vxpose.xlu0.b32.cont [3/16] %v1935, 128
    %2059 = vxpose.xlu0.b32.cont [4/16] %v1936, 128
    %2060 = vxpose.xlu0.b32.cont [5/16] %v1937, 128
    %2061 = vxpose.xlu0.b32.cont [6/16] %v1938, 128
    %2062 = vxpose.xlu0.b32.cont [7/16] %v1939, 128
    %2063 = vxpose.xlu0.b32.cont [8/16] %v1940, 128
    %2064 = vxpose.xlu0.b32.cont [9/16] %v1941, 128
    %2065 = vxpose.xlu0.b32.cont [10/16] %v1942, 128
    %2066 = vxpose.xlu0.b32.cont [11/16] %v1943, 128
    %2067 = vxpose.xlu0.b32.cont [12/16] %v1944, 128
    %2068 = vxpose.xlu0.b32.cont [13/16] %v1945, 128
    %2069 = vxpose.xlu0.b32.cont [14/16] %v1946, 128
    %2070 = vxpose.xlu0.b32.cont [15/16] %v1947, 128
    %2071 = vxpose.xlu0.b32.end [16/16] %v1948, 128
    %v2072 = vpop.trf.xlu0
    %v2073 = vpop.trf.xlu0
    %v2074 = vpop.trf.xlu0
    %v2075 = vpop.trf.xlu0
    %v2076 = vpop.trf.xlu0
    %v2077 = vpop.trf.xlu0
    %v2078 = vpop.trf.xlu0
    %v2079 = vpop.trf.xlu0
    %v2080 = vpop.trf.xlu0
    %v2081 = vpop.trf.xlu0
    %v2082 = vpop.trf.xlu0
    %v2083 = vpop.trf.xlu0
    %v2084 = vpop.trf.xlu0
    %v2085 = vpop.trf.xlu0
    %v2086 = vpop.trf.xlu0
    %v2087 = vpop.trf.xlu0
    %2088 = vxpose.xlu0.b32.start [1/16] %v1949, 128
    %2089 = vxpose.xlu0.b32.cont [2/16] %v1950, 128
    %2090 = vxpose.xlu0.b32.cont [3/16] %v1951, 128
    %2091 = vxpose.xlu0.b32.cont [4/16] %v1952, 128
    %2092 = vxpose.xlu0.b32.cont [5/16] %v1953, 128
    %2093 = vxpose.xlu0.b32.cont [6/16] %v1954, 128
    %2094 = vxpose.xlu0.b32.cont [7/16] %v1955, 128
    %2095 = vxpose.xlu0.b32.cont [8/16] %v1956, 128
    %2096 = vxpose.xlu0.b32.cont [9/16] %v1957, 128
    %2097 = vxpose.xlu0.b32.cont [10/16] %v1958, 128
    %2098 = vxpose.xlu0.b32.cont [11/16] %v1959, 128
    %2099 = vxpose.xlu0.b32.cont [12/16] 0.0, 128
    %2100 = vxpose.xlu0.b32.cont [13/16] 0.0, 128
    %2101 = vxpose.xlu0.b32.cont [14/16] 0.0, 128
    %2102 = vxpose.xlu0.b32.cont [15/16] 0.0, 128
    %2103 = vxpose.xlu0.b32.end [16/16] 0.0, 128
    %v2104 = vpop.trf.xlu0
    %v2105 = vpop.trf.xlu0
    %v2106 = vpop.trf.xlu0
    %v2107 = vpop.trf.xlu0
    %v2108 = vpop.trf.xlu0
    %v2109 = vpop.trf.xlu0
    %v2110 = vpop.trf.xlu0
    %v2111 = vpop.trf.xlu0
    %v2112 = vpop.trf.xlu0
    %v2113 = vpop.trf.xlu0
    %v2114 = vpop.trf.xlu0
    %v2115 = vpop.trf.xlu0
    %v2116 = vpop.trf.xlu0
    %v2117 = vpop.trf.xlu0
    %v2118 = vpop.trf.xlu0
    %v2119 = vpop.trf.xlu0
    %vm2120 = vcmask 719872
    %v2122 = vsel %vm2120, %v2104, 0
    %v2125 = vsel %vm2120, %v2105, 0
    %v2128 = vsel %vm2120, %v2106, 0
    %v2131 = vsel %vm2120, %v2107, 0
    %2133 = vmatprep.subr.mxu0 0.0
    %2134 = vmatpush1.msra.mxu0 %v836
    %2135 = vmatprep.subr.mxu0 0.0
    %2136 = vmatpush1.msra.mxu0 %v838
    %2137 = vmatprep.subr.mxu0 0.0
    %2138 = vmatpush1.msra.mxu0 %v840
    %2139 = vmatprep.subr.mxu0 0.0
    %2140 = vmatpush1.msra.mxu0 %v842
    %2141 = vmatprep.subr.mxu0 0.0
    %2142 = vmatpush1.msra.mxu0 %v844
    %2143 = vmatprep.subr.mxu0 0.0
    %2144 = vmatpush1.msra.mxu0 %v846
    %2145 = vmatprep.subr.mxu0 0.0
    %2146 = vmatpush1.msra.mxu0 %v848
    %2147 = vmatprep.subr.mxu0 0.0
    %2148 = vmatpush1.msra.mxu0 %v850
    %2149 = vmatprep.subr.mxu0 0.0
    %2150 = vmatpush1.msra.mxu0 %v852
    %2151 = vmatprep.subr.mxu0 0.0
    %2152 = vmatpush1.msra.mxu0 %v854
    %2153 = vmatprep.subr.mxu0 0.0
    %2154 = vmatpush1.msra.mxu0 %v856
    %2155 = vmatprep.subr.mxu0 0.0
    %2156 = vmatpush1.msra.mxu0 %v858
    %2157 = vmatprep.subr.mxu0 0.0
    %2158 = vmatpush1.msra.mxu0 %v860
    %2159 = vmatprep.subr.mxu0 0.0
    %2160 = vmatpush1.msra.mxu0 %v862
    %2161 = vmatprep.subr.mxu0 0.0
    %2162 = vmatpush1.msra.mxu0 %v864
    %2163 = vmatprep.subr.mxu0 0.0
    %2164 = vmatpush1.msra.mxu0 %v866
    %2165 = vmatprep.subr.mxu0 0.0
    %2166 = vmatpush1.msra.mxu0 %v868
    %2167 = vmatprep.subr.mxu0 0.0
    %2168 = vmatpush1.msra.mxu0 %v870
    %2169 = vmatprep.subr.mxu0 0.0
    %2170 = vmatpush1.msra.mxu0 %v872
    %2171 = vmatprep.subr.mxu0 0.0
    %2172 = vmatpush1.msra.mxu0 %v874
    %2173 = vmatprep.subr.mxu0 0.0
    %2174 = vmatpush1.msra.mxu0 %v876
    %2175 = vmatprep.subr.mxu0 0.0
    %2176 = vmatpush1.msra.mxu0 %v878
    %2177 = vmatprep.subr.mxu0 0.0
    %2178 = vmatpush1.msra.mxu0 %v880
    %2179 = vmatprep.subr.mxu0 0.0
    %2180 = vmatpush1.msra.mxu0 %v882
    %2181 = vmatprep.subr.mxu0 0.0
    %2182 = vmatpush1.msra.mxu0 %v884
    %2183 = vmatprep.subr.mxu0 0.0
    %2184 = vmatpush1.msra.mxu0 %v886
    %2185 = vmatprep.subr.mxu0 0.0
    %2186 = vmatpush1.msra.mxu0 %v888
    %2187 = vmatprep.subr.mxu0 0.0
    %2188 = vmatpush1.msra.mxu0 %v890
    %2189 = vmatprep.subr.mxu0 0.0
    %2190 = vmatpush1.msra.mxu0 %v892
    %2191 = vmatprep.subr.mxu0 0.0
    %2192 = vmatpush1.msra.mxu0 %v894
    %2193 = vmatprep.subr.mxu0 0.0
    %2194 = vmatpush1.msra.mxu0 %v896
    %2195 = vmatprep.subr.mxu0 0.0
    %2196 = vmatpush1.msra.mxu0 %v898
    %2197 = vmatprep.mubr.f32.mxu0 %v2008
    %2198 = vmatmul.mubr.f32.gmra.mrb[0].mxu0 %v1976
    %v2199 = vpop.f32.mrb[0].mxu0
    %v2200 = vadd.f32 0.0, %v2199
    %v2201 = vpop.f32.mrb[0].mxu0
    %2202 = vmatprep.mubr.f32.mxu0 %v2009
    %2203 = vmatmul.mubr.f32.gmra.mrb[0].mxu0 %v1977
    %v2204 = vpop.f32.mrb[0].mxu0
    %v2205 = vadd.f32 0.0, %v2204
    %v2206 = vpop.f32.mrb[0].mxu0
    %2207 = vmatprep.mubr.f32.mxu0 %v2010
    %2208 = vmatmul.mubr.f32.gmra.mrb[0].mxu0 %v1978
    %v2209 = vpop.f32.mrb[0].mxu0
    %v2210 = vadd.f32 0.0, %v2209
    %v2211 = vpop.f32.mrb[0].mxu0
    %2212 = vmatprep.mubr.f32.mxu0 %v2011
    %2213 = vmatmul.mubr.f32.gmra.mrb[0].mxu0 %v1979
    %v2214 = vpop.f32.mrb[0].mxu0
    %v2215 = vadd.f32 0.0, %v2214
    %v2216 = vpop.f32.mrb[0].mxu0
    %2217 = vdwg.mxu0
    %2218 = vmatprep.subr.mxu0 0.0
    %2219 = vmatpush1.msra.mxu0 %v900
    %2220 = vmatprep.subr.mxu0 0.0
    %2221 = vmatpush1.msra.mxu0 %v902
    %2222 = vmatprep.subr.mxu0 0.0
    %2223 = vmatpush1.msra.mxu0 %v904
    %2224 = vmatprep.subr.mxu0 0.0
    %2225 = vmatpush1.msra.mxu0 %v906
    %2226 = vmatprep.subr.mxu0 0.0
    %2227 = vmatpush1.msra.mxu0 %v908
    %2228 = vmatprep.subr.mxu0 0.0
    %2229 = vmatpush1.msra.mxu0 %v910
    %2230 = vmatprep.subr.mxu0 0.0
    %2231 = vmatpush1.msra.mxu0 %v912
    %2232 = vmatprep.subr.mxu0 0.0
    %2233 = vmatpush1.msra.mxu0 %v914
    %2234 = vmatprep.subr.mxu0 0.0
    %2235 = vmatpush1.msra.mxu0 %v916
    %2236 = vmatprep.subr.mxu0 0.0
    %2237 = vmatpush1.msra.mxu0 %v918
    %2238 = vmatprep.subr.mxu0 0.0
    %2239 = vmatpush1.msra.mxu0 %v920
    %2240 = vmatprep.subr.mxu0 0.0
    %2241 = vmatpush1.msra.mxu0 %v922
    %2242 = vmatprep.subr.mxu0 0.0
    %2243 = vmatpush1.msra.mxu0 %v924
    %2244 = vmatprep.subr.mxu0 0.0
    %2245 = vmatpush1.msra.mxu0 %v926
    %2246 = vmatprep.subr.mxu0 0.0
    %2247 = vmatpush1.msra.mxu0 %v928
    %2248 = vmatprep.subr.mxu0 0.0
    %2249 = vmatpush1.msra.mxu0 %v930
    %2250 = vmatprep.subr.mxu0 0.0
    %2251 = vmatpush1.msra.mxu0 %v932
    %2252 = vmatprep.subr.mxu0 0.0
    %2253 = vmatpush1.msra.mxu0 %v934
    %2254 = vmatprep.subr.mxu0 0.0
    %2255 = vmatpush1.msra.mxu0 %v936
    %2256 = vmatprep.subr.mxu0 0.0
    %2257 = vmatpush1.msra.mxu0 %v938
    %2258 = vmatprep.subr.mxu0 0.0
    %2259 = vmatpush1.msra.mxu0 %v940
    %2260 = vmatprep.subr.mxu0 0.0
    %2261 = vmatpush1.msra.mxu0 %v942
    %2262 = vmatprep.subr.mxu0 0.0
    %2263 = vmatpush1.msra.mxu0 %v944
    %2264 = vmatprep.subr.mxu0 0.0
    %2265 = vmatpush1.msra.mxu0 %v946
    %2266 = vmatprep.subr.mxu0 0.0
    %2267 = vmatpush1.msra.mxu0 %v948
    %2268 = vmatprep.subr.mxu0 0.0
    %2269 = vmatpush1.msra.mxu0 %v950
    %2270 = vmatprep.subr.mxu0 0.0
    %2271 = vmatpush1.msra.mxu0 %v952
    %2272 = vmatprep.subr.mxu0 0.0
    %2273 = vmatpush1.msra.mxu0 %v954
    %2274 = vmatprep.subr.mxu0 0.0
    %2275 = vmatpush1.msra.mxu0 %v956
    %2276 = vmatprep.subr.mxu0 0.0
    %2277 = vmatpush1.msra.mxu0 %v958
    %2278 = vmatprep.subr.mxu0 0.0
    %2279 = vmatpush1.msra.mxu0 %v960
    %2280 = vmatprep.subr.mxu0 0.0
    %2281 = vmatpush1.msra.mxu0 %v962
    %2282 = vmatprep.mubr.f32.mxu0 %v2072
    %2283 = vmatmul.mubr.f32.gmra.mrb[0].mxu0 %v2040
    %v2284 = vpop.f32.mrb[0].mxu0
    %v2285 = vadd.f32 %v2200, %v2284
    %v2286 = vpop.f32.mrb[0].mxu0
    %2287 = vmatprep.mubr.f32.mxu0 %v2073
    %2288 = vmatmul.mubr.f32.gmra.mrb[0].mxu0 %v2041
    %v2289 = vpop.f32.mrb[0].mxu0
    %v2290 = vadd.f32 %v2205, %v2289
    %v2291 = vpop.f32.mrb[0].mxu0
    %2292 = vmatprep.mubr.f32.mxu0 %v2074
    %2293 = vmatmul.mubr.f32.gmra.mrb[0].mxu0 %v2042
    %v2294 = vpop.f32.mrb[0].mxu0
    %v2295 = vadd.f32 %v2210, %v2294
    %v2296 = vpop.f32.mrb[0].mxu0
    %2297 = vmatprep.mubr.f32.mxu0 %v2075
    %2298 = vmatmul.mubr.f32.gmra.mrb[0].mxu0 %v2043
    %v2299 = vpop.f32.mrb[0].mxu0
    %v2300 = vadd.f32 %v2215, %v2299
    %v2301 = vpop.f32.mrb[0].mxu0
    %2302 = vdwg.mxu0
    %2303 = vmatprep.subr.mxu0 0.0
    %2304 = vmatpush1.msra.mxu0 %v964
    %2305 = vmatprep.subr.mxu0 0.0
    %2306 = vmatpush1.msra.mxu0 %v966
    %2307 = vmatprep.subr.mxu0 0.0
    %2308 = vmatpush1.msra.mxu0 %v968
    %2309 = vmatprep.subr.mxu0 0.0
    %2310 = vmatpush1.msra.mxu0 %v970
    %2311 = vmatprep.subr.mxu0 0.0
    %2312 = vmatpush1.msra.mxu0 %v972
    %2313 = vmatprep.subr.mxu0 0.0
    %2314 = vmatpush1.msra.mxu0 %v974
    %2315 = vmatprep.subr.mxu0 0.0
    %2316 = vmatpush1.msra.mxu0 %v976
    %2317 = vmatprep.subr.mxu0 0.0
    %2318 = vmatpush1.msra.mxu0 %v978
    %2319 = vmatprep.subr.mxu0 0.0
    %2320 = vmatpush1.msra.mxu0 %v980
    %2321 = vmatprep.subr.mxu0 0.0
    %2322 = vmatpush1.msra.mxu0 %v982
    %2323 = vmatprep.subr.mxu0 0.0
    %2324 = vmatpush1.msra.mxu0 %v984
    %2325 = vmatprep.subr.mxu0 0.0
    %2326 = vmatpush1.msra.mxu0 0.0
    %2327 = vmatprep.subr.mxu0 0.0
    %2328 = vmatpush1.msra.mxu0 0.0
    %2329 = vmatprep.subr.mxu0 0.0
    %2330 = vmatpush1.msra.mxu0 0.0
    %2331 = vmatprep.subr.mxu0 0.0
    %2332 = vmatpush1.msra.mxu0 0.0
    %2333 = vmatprep.subr.mxu0 0.0
    %2334 = vmatpush1.msra.mxu0 0.0
    %2335 = vmatprep.subr.mxu0 0.0
    %2336 = vmatpush1.msra.mxu0 0.0
    %2337 = vmatprep.subr.mxu0 0.0
    %2338 = vmatpush1.msra.mxu0 0.0
    %2339 = vmatprep.subr.mxu0 0.0
    %2340 = vmatpush1.msra.mxu0 0.0
    %2341 = vmatprep.subr.mxu0 0.0
    %2342 = vmatpush1.msra.mxu0 0.0
    %2343 = vmatprep.subr.mxu0 0.0
    %2344 = vmatpush1.msra.mxu0 0.0
    %2345 = vmatprep.subr.mxu0 0.0
    %2346 = vmatpush1.msra.mxu0 0.0
    %2347 = vmatprep.subr.mxu0 0.0
    %2348 = vmatpush1.msra.mxu0 0.0
    %2349 = vmatprep.subr.mxu0 0.0
    %2350 = vmatpush1.msra.mxu0 0.0
    %2351 = vmatprep.subr.mxu0 0.0
    %2352 = vmatpush1.msra.mxu0 0.0
    %2353 = vmatprep.subr.mxu0 0.0
    %2354 = vmatpush1.msra.mxu0 0.0
    %2355 = vmatprep.subr.mxu0 0.0
    %2356 = vmatpush1.msra.mxu0 0.0
    %2357 = vmatprep.subr.mxu0 0.0
    %2358 = vmatpush1.msra.mxu0 0.0
    %2359 = vmatprep.subr.mxu0 0.0
    %2360 = vmatpush1.msra.mxu0 0.0
    %2361 = vmatprep.subr.mxu0 0.0
    %2362 = vmatpush1.msra.mxu0 0.0
    %2363 = vmatprep.subr.mxu0 0.0
    %2364 = vmatpush1.msra.mxu0 0.0
    %2365 = vmatprep.subr.mxu0 0.0
    %2366 = vmatpush1.msra.mxu0 0.0
    %2367 = vmatprep.mubr.f32.mxu0 0.0
    %2368 = vmatmul.mubr.f32.gmra.mrb[0].mxu0 %v2122
    %v2369 = vpop.f32.mrb[0].mxu0
    %v2370 = vadd.f32 %v2285, %v2369
    %v2371 = vpop.f32.mrb[0].mxu0
    %2372 = vmatprep.mubr.f32.mxu0 0.0
    %2373 = vmatmul.mubr.f32.gmra.mrb[0].mxu0 %v2125
    %v2374 = vpop.f32.mrb[0].mxu0
    %v2375 = vadd.f32 %v2290, %v2374
    %v2376 = vpop.f32.mrb[0].mxu0
    %2377 = vmatprep.mubr.f32.mxu0 0.0
    %2378 = vmatmul.mubr.f32.gmra.mrb[0].mxu0 %v2128
    %v2379 = vpop.f32.mrb[0].mxu0
    %v2380 = vadd.f32 %v2295, %v2379
    %v2381 = vpop.f32.mrb[0].mxu0
    %2382 = vmatprep.mubr.f32.mxu0 0.0
    %2383 = vmatmul.mubr.f32.gmra.mrb[0].mxu0 %v2131
    %v2384 = vpop.f32.mrb[0].mxu0
    %v2385 = vadd.f32 %v2300, %v2384
    %v2386 = vpop.f32.mrb[0].mxu0
    %2387 = vdwg.mxu0
    %v2388 = vsel %vm159, %v2370, 0.0
    %2389 = vadd.xlane.f32.xlu0 %v2388
    %v2390 = vpop.xlane.xlu0 %2389
    %v2391 = vsel %vm159, %v2375, 0.0
    %2392 = vadd.xlane.f32.xlu0 %v2391
    %v2393 = vpop.xlane.xlu0 %2392
    %v2394 = vsel %vm159, %v2380, 0.0
    %2395 = vadd.xlane.f32.xlu0 %v2394
    %v2396 = vpop.xlane.xlu0 %2395
    %v2397 = vsel %vm159, %v2385, 0.0
    %2398 = vadd.xlane.f32.xlu0 %v2397
    %v2399 = vpop.xlane.xlu0 %2398
    %v2404 = vlaneseq
    %v2405 = vand.u32 %v2404, 127
    %v2406 = vlaneseq
    %v2407 = vshrl.u32 %v2406, 7
    %v2408 = vsub.s32 %v2405, %v2407
    %v2409 = vrot.slane %v2390, %v2408
    %v2410 = vadd.s32 %v2405, 4294967288
    %v2411 = vlaneseq
    %v2412 = vshrl.u32 %v2411, 7
    %v2413 = vsub.s32 %v2410, %v2412
    %v2414 = vrot.slane %v2393, %v2413
    %vm2415 = vcmask 130112
    %v2416 = vsel %vm2415, %v2414, %v2409
    %v2417 = vadd.s32 %v2405, 4294967280
    %v2418 = vlaneseq
    %v2419 = vshrl.u32 %v2418, 7
    %v2420 = vsub.s32 %v2417, %v2419
    %v2421 = vrot.slane %v2396, %v2420
    %vm2422 = vcmask 195712
    %v2423 = vsel %vm2422, %v2421, %v2416
    %v2424 = vadd.s32 %v2405, 4294967272
    %v2425 = vlaneseq
    %v2426 = vshrl.u32 %v2425, 7
    %v2427 = vsub.s32 %v2424, %v2426
    %v2428 = vrot.slane %v2399, %v2427
    %vm2429 = vcmask 261312
    %v2430 = vsel %vm2429, %v2428, %v2423
    %vm2431 = vcmask 1042434
    %v2432 = vsel %vm2431, %v2430, %v2430
    %vm2433 = vcmask 1043459
    %v2434 = vsel %vm2433, %v2430, %v2432
    %vm2435 = vcmask 1044484
    %v2436 = vsel %vm2435, %v2430, %v2434
    %vm2437 = vcmask 1045509
    %v2438 = vsel %vm2437, %v2430, %v2436
    %vm2439 = vcmask 1046534
    %v2440 = vsel %vm2439, %v2430, %v2438
    %vm2441 = vcmask 1047559
    %v2442 = vsel %vm2441, %v2430, %v2440
    %v2444 = vrcp.pop %v2442
    %v2445 = vmul.f32 %v2370, %v2444
    %v2446 = vmul.f32 %v2375, %v2444
    %v2447 = vmul.f32 %v2380, %v2444
    %v2448 = vmul.f32 %v2385, %v2444
    %v2449 = vlaneseq
    %v2450 = vshrl.u32 %v2449, 7
    %v2451 = vadd.s32 %v2450, 8
    %v2452 = vadd.s32 %v2450, 16
    %v2453 = vadd.s32 %v2450, 24
    %vm2454 = vcmp.eq.s32.totalorder %v2450, %v2405
    %vm2455 = vcmp.eq.s32.totalorder %v2451, %v2405
    %vm2456 = vcmp.eq.s32.totalorder %v2452, %v2405
    %vm2457 = vcmp.eq.s32.totalorder %v2453, %v2405
    %v2458 = vsel %vm2454, %v2445, 0.0
    %v2459 = vsel %vm2455, %v2446, 0.0
    %v2460 = vsel %vm2456, %v2447, 0.0
    %v2461 = vsel %vm2457, %v2448, 0.0
    %v2462 = vsel %vm159, %v2458, 0.0
    %v2463 = vsel %vm159, %v2459, 0.0
    %v2464 = vadd.f32 %v2462, %v2463
    %v2465 = vsel %vm159, %v2460, 0.0
    %v2466 = vadd.f32 %v2464, %v2465
    %v2467 = vsel %vm159, %v2461, 0.0
    %v2468 = vadd.f32 %v2466, %v2467
    %2469 = vadd.xlane.f32.xlu0 %v2468
    %v2470 = vpop.xlane.xlu0 %2469
    %v2471 = vrot.slane %v2470, 4
    %v2472 = vadd.f32 %v2470, %v2471
    %v2473 = vrot.slane %v2472, 2
    %v2474 = vadd.f32 %v2472, %v2473
    %v2475 = vrot.slane %v2474, 1
    %v2476 = vadd.f32 %v2474, %v2475
    %s2477 = vtos %v2476
    %v2478 = vsel %vm159, %v2445, 0.0
    %v2479 = vsel %vm159, %v2446, 0.0
    %v2480 = vadd.f32 %v2478, %v2479
    %v2481 = vsel %vm159, %v2447, 0.0
    %v2482 = vadd.f32 %v2480, %v2481
    %v2483 = vsel %vm159, %v2448, 0.0
    %v2484 = vadd.f32 %v2482, %v2483
    %2485 = vadd.xlane.f32.xlu0 %v2484
    %v2486 = vpop.xlane.xlu0 %2485
    %v2487 = vrot.slane %v2486, 4
    %v2488 = vadd.f32 %v2486, %v2487
    %v2489 = vrot.slane %v2488, 2
    %v2490 = vadd.f32 %v2488, %v2489
    %v2491 = vrot.slane %v2490, 1
    %v2492 = vadd.f32 %v2490, %v2491
    %s2493 = vtos %v2492
    %s2494 = ssub.f32 %s2493, %s2477
    %v2495 = vrcp.pop 32.0
    %s2496 = vtos %v2495
    %s2497 = smul.f32 %s2494, %s2496
    %s2498 = scalar_lea.smem [#allocation2], 0
    %2499 = sst [smem:[%s2498]] %s2497
    // Predicated region
    $region6: #{tpu_custom_call.1} parent=1 // pred_check
      _
    $region7: #{tpu_custom_call.1} parent=1 // pred_check_branch
      %2501 = sbr.rel (0) target = $region9
    $region8: #{tpu_custom_call.1} parent=1 // pred_region
      %s2503 = ssub.s32 16, 16
      %2504 = vsyncadd [#allocation3], %s2503
      %2507 = dma.smem_to_hbm [#allocation2], 16, %s1, [#allocation3]
    $region9: #{tpu_custom_call.1} parent=1 // pred_fallthru
      _
    // Predicated region
    $region10: #{tpu_custom_call.1} parent=1 // pred_check
      _
    $region11: #{tpu_custom_call.1} parent=1 // pred_check_branch
      %2509 = sbr.rel (0) target = $region13
    $region12: #{tpu_custom_call.1} parent=1 // pred_region
      %2510 = dma.done [#allocation3], 16
    $region13: #{tpu_custom_call.1} parent=1 // pred_fallthru
      _
    %2511 = sfence
    %2512 = vsyncpa [#allocation3], 1

</llo_original>
